<compile_context>
chip_gen: v6e
topology: v6e:2x2x1
jax: 0.10.0
libtpu: 0.0.40
codegen_flags: <defaults>
</compile_context>

<pallas_src>
import functools
import math

import jax
import jax.numpy as jnp
from jax.experimental import pallas as pl
from jax.experimental.pallas import tpu as pltpu


# --------------------------------------------------------------------------
# In-kernel helpers
# --------------------------------------------------------------------------

def _masked_layernorm(x, gamma, beta, valid_cols, eps):
    """LayerNorm over the first `valid_cols` lanes of x (padding lanes are 0)."""
    cols = jax.lax.broadcasted_iota(jnp.int32, x.shape, 1)
    valid = cols < valid_cols
    inv_n = 1.0 / float(valid_cols)
    mu = jnp.sum(x, axis=-1, keepdims=True) * inv_n          # pad lanes are zero
    diff = jnp.where(valid, x - mu, 0.0)
    var = jnp.sum(diff * diff, axis=-1, keepdims=True) * inv_n
    y = diff * jax.lax.rsqrt(var + eps)
    # gamma/beta are zero in padded lanes -> padded lanes stay exactly 0.
    return y * gamma + beta


# --------------------------------------------------------------------------
# Pallas kernels
# --------------------------------------------------------------------------

def _layernorm_kernel(x_ref, g_ref, b_ref, o_ref, *, valid_cols, eps):
    o_ref[...] = _masked_layernorm(x_ref[...], g_ref[...], b_ref[...],
                                   valid_cols, eps)


def _encoder_layer_kernel(x_ref, mask_ref,
                          wqkv_ref, bqkv_ref, wo_ref, bo_ref,
                          ln1g_ref, ln1b_ref,
                          w1_ref, b1_ref, w2_ref, b2_ref,
                          ln2g_ref, ln2b_ref,
                          o_ref, *, num_heads, hidden_size, eps):
    """One full BERT encoder layer for one batch element (all heads)."""
    dh = hidden_size // num_heads
    scale = 1.0 / math.sqrt(dh)

    x = x_ref[0]                                    # (S, Hp) f32, pad lanes = 0
    mask = mask_ref[0]                              # (1, S)  additive (0 / -1e4)

    # ---- fused QKV projection: bf16 operands, f32 accumulation ----
    qkv = jnp.dot(x.astype(jnp.bfloat16), wqkv_ref[...],
                  preferred_element_type=jnp.float32) + bqkv_ref[...]   # (S, 3H)

    # ---- self-attention: all heads of this batch element ----
    ctx_heads = []
    for h in range(num_heads):
        qh = qkv[:, h * dh:(h + 1) * dh]                                # (S, dh)
        kh = qkv[:, hidden_size + h * dh: hidden_size + (h + 1) * dh]
        vh = qkv[:, 2 * hidden_size + h * dh: 2 * hidden_size + (h + 1) * dh]
        s = jnp.dot(qh, kh.T, preferred_element_type=jnp.float32) * scale + mask
        s = s - jnp.max(s, axis=-1, keepdims=True)
        p = jnp.exp(s)                                                  # f32 (EUP)
        p = p * pl.reciprocal(jnp.sum(p, axis=-1, keepdims=True), approx=True)
        # attention_probs_dropout_prob=0.5 is identity in eval mode.
        ctx_heads.append(jnp.dot(p, vh, preferred_element_type=jnp.float32))
    ctx = jnp.concatenate(ctx_heads, axis=-1)                           # (S, H)

    # ---- output projection + residual + LayerNorm1 ----
    attn = jnp.dot(ctx.astype(jnp.bfloat16), wo_ref[...],
                   preferred_element_type=jnp.float32) + bo_ref[...]    # (S, Hp)
    h1 = _masked_layernorm(attn + x, ln1g_ref[...], ln1b_ref[...],
                           hidden_size, eps)

    # ---- FFN: dense + GELU, dense, residual + LayerNorm2 ----
    f = jnp.dot(h1.astype(jnp.bfloat16), w1_ref[...],
                preferred_element_type=jnp.float32) + b1_ref[...]       # (S, Ip)
    # TODO(synk): HF BERT uses exact erf-GELU; tanh approximation used here
    # for guaranteed Mosaic lowering.
    f = jax.nn.gelu(f, approximate=True)
    f = jnp.dot(f.astype(jnp.bfloat16), w2_ref[...],
                preferred_element_type=jnp.float32) + b2_ref[...]       # (S, Hp)
    h2 = _masked_layernorm(f + h1, ln2g_ref[...], ln2b_ref[...],
                           hidden_size, eps)

    o_ref[0] = h2


def _pooler_classifier_kernel(cls_ref, pw_ref, pb_ref, fw_ref, fb_ref, o_ref):
    """Pooler (dense + tanh on [CLS]) fused with the classifier head."""
    cls = cls_ref[...].astype(jnp.bfloat16)                             # (B, Hp)
    pooled = jnp.tanh(jnp.dot(cls, pw_ref[...],
                              preferred_element_type=jnp.float32) + pb_ref[...])
    # self.dropout = nn.Dropout(0.5) -> identity in eval mode.
    logits = jnp.dot(pooled.astype(jnp.bfloat16), fw_ref[...],
                     preferred_element_type=jnp.float32) + fb_ref[...]  # (B, Np)
    o_ref[...] = logits


# --------------------------------------------------------------------------
# pallas_call wrappers
# --------------------------------------------------------------------------

def layer_norm(x, gamma, beta, *, valid_cols, eps=1e-12):
    M, Hp = x.shape
    kernel = functools.partial(_layernorm_kernel, valid_cols=valid_cols, eps=eps)
    return pl.pallas_call(
        kernel,
        out_shape=jax.ShapeDtypeStruct((M, Hp), jnp.float32),
        grid=(1,),
        in_specs=[pl.BlockSpec((M, Hp), lambda i: (0, 0)),
                  pl.BlockSpec((1, Hp), lambda i: (0, 0)),
                  pl.BlockSpec((1, Hp), lambda i: (0, 0))],
        out_specs=pl.BlockSpec((M, Hp), lambda i: (0, 0)),
    )(x, gamma, beta)


def encoder_layer(hidden, add_mask, lyr, *, num_heads, hidden_size, eps=1e-12):
    B, S, Hp = hidden.shape
    weights = (lyr["wqkv"], lyr["bqkv"], lyr["wo"], lyr["bo"],
               lyr["ln1_g"], lyr["ln1_b"], lyr["w1"], lyr["b1"],
               lyr["w2"], lyr["b2"], lyr["ln2_g"], lyr["ln2_b"])
    kernel = functools.partial(_encoder_layer_kernel, num_heads=num_heads,
                               hidden_size=hidden_size, eps=eps)
    in_specs = ([pl.BlockSpec((1, S, Hp), lambda b: (b, 0, 0)),
                 pl.BlockSpec((1, 1, S), lambda b: (b, 0, 0))]
                + [pl.BlockSpec(w.shape, lambda b: (0, 0)) for w in weights])
    return pl.pallas_call(
        kernel,
        out_shape=jax.ShapeDtypeStruct((B, S, Hp), jnp.float32),
        grid=(B,),
        in_specs=in_specs,
        out_specs=pl.BlockSpec((1, S, Hp), lambda b: (b, 0, 0)),
        compiler_params=pltpu.CompilerParams(dimension_semantics=("parallel",)),
    )(hidden, add_mask, *weights)


def pooler_classifier(cls_tok, pool_w, pool_b, fc_w, fc_b):
    B, Hp = cls_tok.shape
    Np = fc_w.shape[1]
    return pl.pallas_call(
        _pooler_classifier_kernel,
        out_shape=jax.ShapeDtypeStruct((B, Np), jnp.float32),
        grid=(1,),
        in_specs=[pl.BlockSpec((B, Hp), lambda i: (0, 0)),
                  pl.BlockSpec(pool_w.shape, lambda i: (0, 0)),
                  pl.BlockSpec(pool_b.shape, lambda i: (0, 0)),
                  pl.BlockSpec(fc_w.shape, lambda i: (0, 0)),
                  pl.BlockSpec(fc_b.shape, lambda i: (0, 0))],
        out_specs=pl.BlockSpec((B, Np), lambda i: (0, 0)),
    )(cls_tok, pool_w, pool_b, fc_w, fc_b)


# --------------------------------------------------------------------------
# Parameters (logical weights generated f32, then zero-padded to lane-dense
# 128-wide shapes and cast to bf16 for matmul operands).
# --------------------------------------------------------------------------

def init_params(key, *, vocab=50, max_pos=16, hidden=32, heads=4,
                num_layers=2, intermediate=64, num_classes=2,
                hidden_pad=128, inter_pad=128, classes_pad=128):
    scale = 0.02
    keys = iter(jax.random.split(key, 8 + num_layers * 8))

    def nrm(shape):
        return scale * jax.random.normal(next(keys), shape, dtype=jnp.float32)

    def pad2d(a, rows, cols, dtype=jnp.float32):
        out = jnp.zeros((rows, cols), jnp.float32).at[:a.shape[0], :a.shape[1]].set(a)
        return out.astype(dtype)

    def pad_gamma(real, padded):
        return jnp.zeros((1, padded), jnp.float32).at[:, :real].set(1.0)

    def zrow(cols):
        return jnp.zeros((1, cols), jnp.float32)

    config = dict(hidden=hidden, heads=heads, hidden_pad=hidden_pad,
                  num_classes=num_classes)
    params = {
        "word_emb": pad2d(nrm((vocab, hidden)), vocab, hidden_pad),
        "pos_emb": pad2d(nrm((max_pos, hidden)), max_pos, hidden_pad),
        "type_emb": pad2d(nrm((2, hidden)), 2, hidden_pad),
        "emb_ln_g": pad_gamma(hidden, hidden_pad),
        "emb_ln_b": zrow(hidden_pad),
        "layers": [],
        "pool_w": pad2d(nrm((hidden, hidden)), hidden_pad, hidden_pad, jnp.bfloat16),
        "pool_b": zrow(hidden_pad),
        "fc_w": pad2d(nrm((hidden, num_classes)), hidden_pad, classes_pad, jnp.bfloat16),
        "fc_b": zrow(classes_pad),
    }
    for _ in range(num_layers):
        wq, wk, wv = nrm((hidden, hidden)), nrm((hidden, hidden)), nrm((hidden, hidden))
        wqkv = jnp.concatenate([wq, wk, wv], axis=1)               # (H, 3H)
        params["layers"].append(dict(
            wqkv=pad2d(wqkv, hidden_pad, 3 * hidden, jnp.bfloat16),
            bqkv=zrow(3 * hidden),
            wo=pad2d(nrm((hidden, hidden)), hidden, hidden_pad, jnp.bfloat16),
            bo=zrow(hidden_pad),
            ln1_g=pad_gamma(hidden, hidden_pad),
            ln1_b=zrow(hidden_pad),
            w1=pad2d(nrm((hidden, intermediate)), hidden_pad, inter_pad, jnp.bfloat16),
            b1=zrow(inter_pad),
            w2=pad2d(nrm((intermediate, hidden)), inter_pad, hidden_pad, jnp.bfloat16),
            b2=zrow(hidden_pad),
            ln2_g=pad_gamma(hidden, hidden_pad),
            ln2_b=zrow(hidden_pad),
        ))
    return params, config


# --------------------------------------------------------------------------
# Forward pass
# --------------------------------------------------------------------------

def bert_classifier_forward(params, input_ids, attention_mask, *, config):
    B, S = input_ids.shape
    H = config["hidden"]
    Hp = config["hidden_pad"]
    nh = config["heads"]
    nc = config["num_classes"]

    # --- embeddings (gather is XLA glue; LayerNorm is a Pallas kernel) ---
    word = jnp.take(params["word_emb"], input_ids, axis=0)        # (B, S, Hp)
    pos = params["pos_emb"][:S][None, :, :]
    tok = params["type_emb"][0][None, None, :]                    # token_type_ids = 0
    emb = (word + pos + tok).reshape(B * S, Hp)
    hidden = layer_norm(emb, params["emb_ln_g"], params["emb_ln_b"], valid_cols=H)
    hidden = hidden.reshape(B, S, Hp)
    # embedding dropout is identity in eval mode

    # additive attention mask, shape (B, 1, S)
    add_mask = ((1.0 - attention_mask.astype(jnp.float32)) * -10000.0
                ).reshape(B, 1, S)

    for lyr in params["layers"]:
        hidden = encoder_layer(hidden, add_mask, lyr,
                               num_heads=nh, hidden_size=H)

    # --- pooler (dense+tanh on [CLS]) fused with the classifier head ---
    cls_tok = hidden[:, 0, :]                                     # (B, Hp)
    logits_padded = pooler_classifier(cls_tok, params["pool_w"], params["pool_b"],
                                      params["fc_w"], params["fc_b"])
    return logits_padded[:, :nc]                                  # (B, num_classes)


# --------------------------------------------------------------------------

if __name__ == "__main__":
    key = jax.random.PRNGKey(0)
    pkey, ikey = jax.random.split(key)

    B, S = 2, 8
    params, config = init_params(pkey, vocab=50, max_pos=16, hidden=32, heads=4,
                                 num_layers=2, intermediate=64, num_classes=2)

    input_ids = jax.random.randint(ikey, (B, S), 0, 50, dtype=jnp.int32)
    attention_mask = jnp.array([[1, 1, 1, 1, 1, 1, 1, 1],
                                [1, 1, 1, 1, 1, 0, 0, 0]], dtype=jnp.int32)

    forward = jax.jit(functools.partial(bert_classifier_forward, config=config))
    logits = jax.block_until_ready(forward(params, input_ids, attention_mask))
    assert logits.shape == (B, 2) and logits.dtype == jnp.float32
    print("KERNEL_OK")
</pallas_src>

<mosaic_0001>
module attributes {stable_mosaic.version = 11 : i64} {
  func.func @_layernorm_kernel(%arg0: i32, %arg1: memref<16x128xf32, #tpu.memory_space<vmem>>, %arg2: memref<1x128xf32, #tpu.memory_space<vmem>>, %arg3: memref<1x128xf32, #tpu.memory_space<vmem>>, %arg4: memref<16x128xf32, #tpu.memory_space<vmem>>) attributes {dimension_semantics = [#tpu.dimension_semantics<arbitrary>], iteration_bounds = array<i64: 1>, scalar_prefetch = 0 : i64, scratch_operands = 0 : i64, tpu.core_type = #tpu.core_type<tc>, window_params = [{pipeline_mode = #tpu.pipeline_mode<synchronous>, transform_indices = @transform_0, window_bounds = array<i64: 16, 128>}, {pipeline_mode = #tpu.pipeline_mode<synchronous>, transform_indices = @transform_1, window_bounds = array<i64: 1, 128>}, {pipeline_mode = #tpu.pipeline_mode<synchronous>, transform_indices = @transform_2, window_bounds = array<i64: 1, 128>}, {pipeline_mode = #tpu.pipeline_mode<synchronous>, transform_indices = @transform_3, window_bounds = array<i64: 16, 128>}]} {
    %c0 = arith.constant 0 : index
    %c0_0 = arith.constant 0 : index
    %0 = vector.load %arg1[%c0, %c0_0] : memref<16x128xf32, #tpu.memory_space<vmem>>, vector<16x128xf32>
    %c0_1 = arith.constant 0 : index
    %c0_2 = arith.constant 0 : index
    %1 = vector.load %arg2[%c0_1, %c0_2] : memref<1x128xf32, #tpu.memory_space<vmem>>, vector<1x128xf32>
    %c0_3 = arith.constant 0 : index
    %c0_4 = arith.constant 0 : index
    %2 = vector.load %arg3[%c0_3, %c0_4] : memref<1x128xf32, #tpu.memory_space<vmem>>, vector<1x128xf32>
    %3 = tpu.iota {dimensions = array<i32: 1>} : vector<16x128xi32>
    %c32_i32 = arith.constant 32 : i32
    %4 = vector.broadcast %c32_i32 : i32 to vector<16x128xi32>
    %5 = arith.cmpi slt, %3, %4 : vector<16x128xi32>
    %cst = arith.constant dense<0.000000e+00> : vector<16xf32>
    %6 = vector.multi_reduction <add>, %0, %cst [1] : vector<16x128xf32> to vector<16xf32>
    %7 = vector.shape_cast %6 : vector<16xf32> to vector<16x1xf32>
    %cst_5 = arith.constant 3.125000e-02 : f32
    %8 = vector.broadcast %cst_5 : f32 to vector<16x1xf32>
    %9 = arith.mulf %7, %8 : vector<16x1xf32>
    %10 = vector.broadcast %9 : vector<16x1xf32> to vector<16x128xf32>
    %11 = arith.subf %0, %10 : vector<16x128xf32>
    %cst_6 = arith.constant 0.000000e+00 : f32
    %12 = vector.broadcast %cst_6 : f32 to vector<16x128xf32>
    %13 = arith.select %5, %11, %12 : vector<16x128xi1>, vector<16x128xf32>
    %14 = arith.mulf %13, %13 : vector<16x128xf32>
    %cst_7 = arith.constant dense<0.000000e+00> : vector<16xf32>
    %15 = vector.multi_reduction <add>, %14, %cst_7 [1] : vector<16x128xf32> to vector<16xf32>
    %16 = vector.shape_cast %15 : vector<16xf32> to vector<16x1xf32>
    %cst_8 = arith.constant 3.125000e-02 : f32
    %17 = vector.broadcast %cst_8 : f32 to vector<16x1xf32>
    %18 = arith.mulf %16, %17 : vector<16x1xf32>
    %cst_9 = arith.constant 9.99999996E-13 : f32
    %19 = vector.broadcast %cst_9 : f32 to vector<16x1xf32>
    %20 = arith.addf %18, %19 : vector<16x1xf32>
    %21 = math.rsqrt %20 : vector<16x1xf32>
    %22 = vector.broadcast %21 : vector<16x1xf32> to vector<16x128xf32>
    %23 = arith.mulf %13, %22 : vector<16x128xf32>
    %24 = vector.broadcast %1 : vector<1x128xf32> to vector<16x128xf32>
    %25 = arith.mulf %23, %24 : vector<16x128xf32>
    %26 = vector.broadcast %2 : vector<1x128xf32> to vector<16x128xf32>
    %27 = arith.addf %25, %26 : vector<16x128xf32>
    %c0_10 = arith.constant 0 : index
    %c0_11 = arith.constant 0 : index
    %28 = vector.load %arg4[%c0_10, %c0_11] : memref<16x128xf32, #tpu.memory_space<vmem>>, vector<16x128xf32>
    tpu.vector_store %arg4[%c0_10, %c0_11], %27 {strides = array<i32>} : memref<16x128xf32, #tpu.memory_space<vmem>>, vector<16x128xf32>,
    return
  }
  func.func @transform_0(%arg0: i32) -> (i32, i32) {
    %c0_i32 = arith.constant 0 : i32
    %c0_i32_0 = arith.constant 0 : i32
    %c0_i32_1 = arith.constant 0 : i32
    return %c0_i32, %c0_i32_0 : i32, i32
  }
  func.func @transform_1(%arg0: i32) -> (i32, i32) {
    %c0_i32 = arith.constant 0 : i32
    %c0_i32_0 = arith.constant 0 : i32
    %c0_i32_1 = arith.constant 0 : i32
    return %c0_i32, %c0_i32_0 : i32, i32
  }
  func.func @transform_2(%arg0: i32) -> (i32, i32) {
    %c0_i32 = arith.constant 0 : i32
    %c0_i32_0 = arith.constant 0 : i32
    %c0_i32_1 = arith.constant 0 : i32
    return %c0_i32, %c0_i32_0 : i32, i32
  }
  func.func @transform_3(%arg0: i32) -> (i32, i32) {
    %c0_i32 = arith.constant 0 : i32
    %c0_i32_0 = arith.constant 0 : i32
    %c0_i32_1 = arith.constant 0 : i32
    return %c0_i32, %c0_i32_0 : i32, i32
  }
}

module attributes {stable_mosaic.version = 11 : i64} {
  func.func @_pooler_classifier_kernel(%arg0: i32, %arg1: memref<2x128xf32, #tpu.memory_space<vmem>>, %arg2: memref<128x128xbf16, #tpu.memory_space<vmem>>, %arg3: memref<1x128xf32, #tpu.memory_space<vmem>>, %arg4: memref<128x128xbf16, #tpu.memory_space<vmem>>, %arg5: memref<1x128xf32, #tpu.memory_space<vmem>>, %arg6: memref<2x128xf32, #tpu.memory_space<vmem>>) attributes {dimension_semantics = [#tpu.dimension_semantics<arbitrary>], iteration_bounds = array<i64: 1>, scalar_prefetch = 0 : i64, scratch_operands = 0 : i64, tpu.core_type = #tpu.core_type<tc>, window_params = [{pipeline_mode = #tpu.pipeline_mode<synchronous>, transform_indices = @transform_0, window_bounds = array<i64: 2, 128>}, {pipeline_mode = #tpu.pipeline_mode<synchronous>, transform_indices = @transform_1, window_bounds = array<i64: 128, 128>}, {pipeline_mode = #tpu.pipeline_mode<synchronous>, transform_indices = @transform_2, window_bounds = array<i64: 1, 128>}, {pipeline_mode = #tpu.pipeline_mode<synchronous>, transform_indices = @transform_3, window_bounds = array<i64: 128, 128>}, {pipeline_mode = #tpu.pipeline_mode<synchronous>, transform_indices = @transform_4, window_bounds = array<i64: 1, 128>}, {pipeline_mode = #tpu.pipeline_mode<synchronous>, transform_indices = @transform_5, window_bounds = array<i64: 2, 128>}]} {
    %c0 = arith.constant 0 : index
    %c0_0 = arith.constant 0 : index
    %0 = vector.load %arg1[%c0, %c0_0] : memref<2x128xf32, #tpu.memory_space<vmem>>, vector<2x128xf32>
    %1 = arith.truncf %0 : vector<2x128xf32> to vector<2x128xbf16>
    %c0_1 = arith.constant 0 : index
    %c0_2 = arith.constant 0 : index
    %2 = vector.load %arg2[%c0_1, %c0_2] : memref<128x128xbf16, #tpu.memory_space<vmem>>, vector<128x128xbf16>
    %cst = arith.constant dense<0.000000e+00> : vector<2x128xf32>
    %3 = tpu.matmul %1, %2, %cst {dimension_numbers = #tpu.dot_dimension_numbers<[1], [0], [0], [1], [0, 0, 1, 1], [], []>} : vector<2x128xbf16>, vector<128x128xbf16>, vector<2x128xf32> -> vector<2x128xf32>
    %c0_3 = arith.constant 0 : index
    %c0_4 = arith.constant 0 : index
    %4 = vector.load %arg3[%c0_3, %c0_4] : memref<1x128xf32, #tpu.memory_space<vmem>>, vector<1x128xf32>
    %5 = vector.broadcast %4 : vector<1x128xf32> to vector<2x128xf32>
    %6 = arith.addf %3, %5 : vector<2x128xf32>
    %7 = math.tanh %6 : vector<2x128xf32>
    %8 = arith.truncf %7 : vector<2x128xf32> to vector<2x128xbf16>
    %c0_5 = arith.constant 0 : index
    %c0_6 = arith.constant 0 : index
    %9 = vector.load %arg4[%c0_5, %c0_6] : memref<128x128xbf16, #tpu.memory_space<vmem>>, vector<128x128xbf16>
    %cst_7 = arith.constant dense<0.000000e+00> : vector<2x128xf32>
    %10 = tpu.matmul %8, %9, %cst_7 {dimension_numbers = #tpu.dot_dimension_numbers<[1], [0], [0], [1], [0, 0, 1, 1], [], []>} : vector<2x128xbf16>, vector<128x128xbf16>, vector<2x128xf32> -> vector<2x128xf32>
    %c0_8 = arith.constant 0 : index
    %c0_9 = arith.constant 0 : index
    %11 = vector.load %arg5[%c0_8, %c0_9] : memref<1x128xf32, #tpu.memory_space<vmem>>, vector<1x128xf32>
    %12 = vector.broadcast %11 : vector<1x128xf32> to vector<2x128xf32>
    %13 = arith.addf %10, %12 : vector<2x128xf32>
    %c0_10 = arith.constant 0 : index
    %c0_11 = arith.constant 0 : index
    %14 = vector.load %arg6[%c0_10, %c0_11] : memref<2x128xf32, #tpu.memory_space<vmem>>, vector<2x128xf32>
    tpu.vector_store %arg6[%c0_10, %c0_11], %13 {strides = array<i32>} : memref<2x128xf32, #tpu.memory_space<vmem>>, vector<2x128xf32>,
    return
  }
  func.func @transform_0(%arg0: i32) -> (i32, i32) {
    %c0_i32 = arith.constant 0 : i32
    %c0_i32_0 = arith.constant 0 : i32
    %c0_i32_1 = arith.constant 0 : i32
    return %c0_i32, %c0_i32_0 : i32, i32
  }
  func.func @transform_1(%arg0: i32) -> (i32, i32) {
    %c0_i32 = arith.constant 0 : i32
    %c0_i32_0 = arith.constant 0 : i32
    %c0_i32_1 = arith.constant 0 : i32
    return %c0_i32, %c0_i32_0 : i32, i32
  }
  func.func @transform_2(%arg0: i32) -> (i32, i32) {
    %c0_i32 = arith.constant 0 : i32
    %c0_i32_0 = arith.constant 0 : i32
    %c0_i32_1 = arith.constant 0 : i32
    return %c0_i32, %c0_i32_0 : i32, i32
  }
  func.func @transform_3(%arg0: i32) -> (i32, i32) {
    %c0_i32 = arith.constant 0 : i32
    %c0_i32_0 = arith.constant 0 : i32
    %c0_i32_1 = arith.constant 0 : i32
    return %c0_i32, %c0_i32_0 : i32, i32
  }
  func.func @transform_4(%arg0: i32) -> (i32, i32) {
    %c0_i32 = arith.constant 0 : i32
    %c0_i32_0 = arith.constant 0 : i32
    %c0_i32_1 = arith.constant 0 : i32
    return %c0_i32, %c0_i32_0 : i32, i32
  }
  func.func @transform_5(%arg0: i32) -> (i32, i32) {
    %c0_i32 = arith.constant 0 : i32
    %c0_i32_0 = arith.constant 0 : i32
    %c0_i32_1 = arith.constant 0 : i32
    return %c0_i32, %c0_i32_0 : i32, i32
  }
}

module attributes {stable_mosaic.version = 11 : i64} {
  func.func @_encoder_layer_kernel(%arg0: i32, %arg1: memref<1x8x128xf32, #tpu.memory_space<vmem>>, %arg2: memref<1x1x8xf32, #tpu.memory_space<vmem>>, %arg3: memref<128x96xbf16, #tpu.memory_space<vmem>>, %arg4: memref<1x96xf32, #tpu.memory_space<vmem>>, %arg5: memref<32x128xbf16, #tpu.memory_space<vmem>>, %arg6: memref<1x128xf32, #tpu.memory_space<vmem>>, %arg7: memref<1x128xf32, #tpu.memory_space<vmem>>, %arg8: memref<1x128xf32, #tpu.memory_space<vmem>>, %arg9: memref<128x128xbf16, #tpu.memory_space<vmem>>, %arg10: memref<1x128xf32, #tpu.memory_space<vmem>>, %arg11: memref<128x128xbf16, #tpu.memory_space<vmem>>, %arg12: memref<1x128xf32, #tpu.memory_space<vmem>>, %arg13: memref<1x128xf32, #tpu.memory_space<vmem>>, %arg14: memref<1x128xf32, #tpu.memory_space<vmem>>, %arg15: memref<1x8x128xf32, #tpu.memory_space<vmem>>) attributes {dimension_semantics = [#tpu.dimension_semantics<parallel>], iteration_bounds = array<i64: 2>, scalar_prefetch = 0 : i64, scratch_operands = 0 : i64, tpu.core_type = #tpu.core_type<tc>, window_params = [{transform_indices = @transform_0, window_bounds = array<i64: 1, 8, 128>}, {transform_indices = @transform_1, window_bounds = array<i64: 1, 1, 8>}, {pipeline_mode = #tpu.pipeline_mode<synchronous>, transform_indices = @transform_2, window_bounds = array<i64: 128, 96>}, {pipeline_mode = #tpu.pipeline_mode<synchronous>, transform_indices = @transform_3, window_bounds = array<i64: 1, 96>}, {pipeline_mode = #tpu.pipeline_mode<synchronous>, transform_indices = @transform_4, window_bounds = array<i64: 32, 128>}, {pipeline_mode = #tpu.pipeline_mode<synchronous>, transform_indices = @transform_5, window_bounds = array<i64: 1, 128>}, {pipeline_mode = #tpu.pipeline_mode<synchronous>, transform_indices = @transform_6, window_bounds = array<i64: 1, 128>}, {pipeline_mode = #tpu.pipeline_mode<synchronous>, transform_indices = @transform_7, window_bounds = array<i64: 1, 128>}, {pipeline_mode = #tpu.pipeline_mode<synchronous>, transform_indices = @transform_8, window_bounds = array<i64: 128, 128>}, {pipeline_mode = #tpu.pipeline_mode<synchronous>, transform_indices = @transform_9, window_bounds = array<i64: 1, 128>}, {pipeline_mode = #tpu.pipeline_mode<synchronous>, transform_indices = @transform_10, window_bounds = array<i64: 128, 128>}, {pipeline_mode = #tpu.pipeline_mode<synchronous>, transform_indices = @transform_11, window_bounds = array<i64: 1, 128>}, {pipeline_mode = #tpu.pipeline_mode<synchronous>, transform_indices = @transform_12, window_bounds = array<i64: 1, 128>}, {pipeline_mode = #tpu.pipeline_mode<synchronous>, transform_indices = @transform_13, window_bounds = array<i64: 1, 128>}, {transform_indices = @transform_14, window_bounds = array<i64: 1, 8, 128>}]} {
    %c0 = arith.constant 0 : index
    %c0_0 = arith.constant 0 : index
    %c0_1 = arith.constant 0 : index
    %0 = vector.load %arg1[%c0, %c0_0, %c0_1] : memref<1x8x128xf32, #tpu.memory_space<vmem>>, vector<1x8x128xf32>
    %1 = vector.shape_cast %0 : vector<1x8x128xf32> to vector<8x128xf32>
    %c0_2 = arith.constant 0 : index
    %c0_3 = arith.constant 0 : index
    %c0_4 = arith.constant 0 : index
    %2 = vector.load %arg2[%c0_2, %c0_3, %c0_4] : memref<1x1x8xf32, #tpu.memory_space<vmem>>, vector<1x1x8xf32>
    %3 = vector.shape_cast %2 : vector<1x1x8xf32> to vector<1x8xf32>
    %4 = arith.truncf %1 : vector<8x128xf32> to vector<8x128xbf16>
    %c0_5 = arith.constant 0 : index
    %c0_6 = arith.constant 0 : index
    %5 = vector.load %arg3[%c0_5, %c0_6] : memref<128x96xbf16, #tpu.memory_space<vmem>>, vector<128x96xbf16>
    %cst = arith.constant dense<0.000000e+00> : vector<8x96xf32>
    %6 = tpu.matmul %4, %5, %cst {dimension_numbers = #tpu.dot_dimension_numbers<[1], [0], [0], [1], [0, 0, 1, 1], [], []>} : vector<8x128xbf16>, vector<128x96xbf16>, vector<8x96xf32> -> vector<8x96xf32>
    %c0_7 = arith.constant 0 : index
    %c0_8 = arith.constant 0 : index
    %7 = vector.load %arg4[%c0_7, %c0_8] : memref<1x96xf32, #tpu.memory_space<vmem>>, vector<1x96xf32>
    %8 = vector.broadcast %7 : vector<1x96xf32> to vector<8x96xf32>
    %9 = arith.addf %6, %8 : vector<8x96xf32>
    %10 = vector.extract_strided_slice %9 {offsets = [0, 0], sizes = [8, 8], strides = [1, 1]} : vector<8x96xf32> to vector<8x8xf32>
    %11 = vector.extract_strided_slice %9 {offsets = [0, 32], sizes = [8, 8], strides = [1, 1]} : vector<8x96xf32> to vector<8x8xf32>
    %12 = vector.extract_strided_slice %9 {offsets = [0, 64], sizes = [8, 8], strides = [1, 1]} : vector<8x96xf32> to vector<8x8xf32>
    %13 = tpu.transpose %11, [1, 0] : vector<8x8xf32> -> vector<8x8xf32>
    %cst_9 = arith.constant dense<0.000000e+00> : vector<8x8xf32>
    %14 = tpu.matmul %10, %13, %cst_9 {dimension_numbers = #tpu.dot_dimension_numbers<[1], [0], [0], [1], [0, 0, 1, 1], [], []>} : vector<8x8xf32>, vector<8x8xf32>, vector<8x8xf32> -> vector<8x8xf32>
    %cst_10 = arith.constant 0.353553385 : f32
    %15 = vector.broadcast %cst_10 : f32 to vector<8x8xf32>
    %16 = arith.mulf %14, %15 : vector<8x8xf32>
    %17 = vector.broadcast %3 : vector<1x8xf32> to vector<8x8xf32>
    %18 = arith.addf %16, %17 : vector<8x8xf32>
    %cst_11 = arith.constant dense<0xFF800000> : vector<8xf32>
    %19 = vector.multi_reduction <maximumf>, %18, %cst_11 [1] : vector<8x8xf32> to vector<8xf32>
    %20 = vector.shape_cast %19 : vector<8xf32> to vector<8x1xf32>
    %21 = vector.broadcast %20 : vector<8x1xf32> to vector<8x8xf32>
    %22 = arith.subf %18, %21 : vector<8x8xf32>
    %23 = math.exp %22 : vector<8x8xf32>
    %cst_12 = arith.constant dense<0.000000e+00> : vector<8xf32>
    %24 = vector.multi_reduction <add>, %23, %cst_12 [1] : vector<8x8xf32> to vector<8xf32>
    %25 = vector.shape_cast %24 : vector<8xf32> to vector<8x1xf32>
    %26 = tpu.reciprocal %25 {approx = true} : vector<8x1xf32> -> vector<8x1xf32>
    %27 = vector.broadcast %26 : vector<8x1xf32> to vector<8x8xf32>
    %28 = arith.mulf %23, %27 : vector<8x8xf32>
    %cst_13 = arith.constant dense<0.000000e+00> : vector<8x8xf32>
    %29 = tpu.matmul %28, %12, %cst_13 {dimension_numbers = #tpu.dot_dimension_numbers<[1], [0], [0], [1], [0, 0, 1, 1], [], []>} : vector<8x8xf32>, vector<8x8xf32>, vector<8x8xf32> -> vector<8x8xf32>
    %30 = vector.extract_strided_slice %9 {offsets = [0, 8], sizes = [8, 8], strides = [1, 1]} : vector<8x96xf32> to vector<8x8xf32>
    %31 = vector.extract_strided_slice %9 {offsets = [0, 40], sizes = [8, 8], strides = [1, 1]} : vector<8x96xf32> to vector<8x8xf32>
    %32 = vector.extract_strided_slice %9 {offsets = [0, 72], sizes = [8, 8], strides = [1, 1]} : vector<8x96xf32> to vector<8x8xf32>
    %33 = tpu.transpose %31, [1, 0] : vector<8x8xf32> -> vector<8x8xf32>
    %cst_14 = arith.constant dense<0.000000e+00> : vector<8x8xf32>
    %34 = tpu.matmul %30, %33, %cst_14 {dimension_numbers = #tpu.dot_dimension_numbers<[1], [0], [0], [1], [0, 0, 1, 1], [], []>} : vector<8x8xf32>, vector<8x8xf32>, vector<8x8xf32> -> vector<8x8xf32>
    %cst_15 = arith.constant 0.353553385 : f32
    %35 = vector.broadcast %cst_15 : f32 to vector<8x8xf32>
    %36 = arith.mulf %34, %35 : vector<8x8xf32>
    %37 = vector.broadcast %3 : vector<1x8xf32> to vector<8x8xf32>
    %38 = arith.addf %36, %37 : vector<8x8xf32>
    %cst_16 = arith.constant dense<0xFF800000> : vector<8xf32>
    %39 = vector.multi_reduction <maximumf>, %38, %cst_16 [1] : vector<8x8xf32> to vector<8xf32>
    %40 = vector.shape_cast %39 : vector<8xf32> to vector<8x1xf32>
    %41 = vector.broadcast %40 : vector<8x1xf32> to vector<8x8xf32>
    %42 = arith.subf %38, %41 : vector<8x8xf32>
    %43 = math.exp %42 : vector<8x8xf32>
    %cst_17 = arith.constant dense<0.000000e+00> : vector<8xf32>
    %44 = vector.multi_reduction <add>, %43, %cst_17 [1] : vector<8x8xf32> to vector<8xf32>
    %45 = vector.shape_cast %44 : vector<8xf32> to vector<8x1xf32>
    %46 = tpu.reciprocal %45 {approx = true} : vector<8x1xf32> -> vector<8x1xf32>
    %47 = vector.broadcast %46 : vector<8x1xf32> to vector<8x8xf32>
    %48 = arith.mulf %43, %47 : vector<8x8xf32>
    %cst_18 = arith.constant dense<0.000000e+00> : vector<8x8xf32>
    %49 = tpu.matmul %48, %32, %cst_18 {dimension_numbers = #tpu.dot_dimension_numbers<[1], [0], [0], [1], [0, 0, 1, 1], [], []>} : vector<8x8xf32>, vector<8x8xf32>, vector<8x8xf32> -> vector<8x8xf32>
    %50 = vector.extract_strided_slice %9 {offsets = [0, 16], sizes = [8, 8], strides = [1, 1]} : vector<8x96xf32> to vector<8x8xf32>
    %51 = vector.extract_strided_slice %9 {offsets = [0, 48], sizes = [8, 8], strides = [1, 1]} : vector<8x96xf32> to vector<8x8xf32>
    %52 = vector.extract_strided_slice %9 {offsets = [0, 80], sizes = [8, 8], strides = [1, 1]} : vector<8x96xf32> to vector<8x8xf32>
    %53 = tpu.transpose %51, [1, 0] : vector<8x8xf32> -> vector<8x8xf32>
    %cst_19 = arith.constant dense<0.000000e+00> : vector<8x8xf32>
    %54 = tpu.matmul %50, %53, %cst_19 {dimension_numbers = #tpu.dot_dimension_numbers<[1], [0], [0], [1], [0, 0, 1, 1], [], []>} : vector<8x8xf32>, vector<8x8xf32>, vector<8x8xf32> -> vector<8x8xf32>
    %cst_20 = arith.constant 0.353553385 : f32
    %55 = vector.broadcast %cst_20 : f32 to vector<8x8xf32>
    %56 = arith.mulf %54, %55 : vector<8x8xf32>
    %57 = vector.broadcast %3 : vector<1x8xf32> to vector<8x8xf32>
    %58 = arith.addf %56, %57 : vector<8x8xf32>
    %cst_21 = arith.constant dense<0xFF800000> : vector<8xf32>
    %59 = vector.multi_reduction <maximumf>, %58, %cst_21 [1] : vector<8x8xf32> to vector<8xf32>
    %60 = vector.shape_cast %59 : vector<8xf32> to vector<8x1xf32>
    %61 = vector.broadcast %60 : vector<8x1xf32> to vector<8x8xf32>
    %62 = arith.subf %58, %61 : vector<8x8xf32>
    %63 = math.exp %62 : vector<8x8xf32>
    %cst_22 = arith.constant dense<0.000000e+00> : vector<8xf32>
    %64 = vector.multi_reduction <add>, %63, %cst_22 [1] : vector<8x8xf32> to vector<8xf32>
    %65 = vector.shape_cast %64 : vector<8xf32> to vector<8x1xf32>
    %66 = tpu.reciprocal %65 {approx = true} : vector<8x1xf32> -> vector<8x1xf32>
    %67 = vector.broadcast %66 : vector<8x1xf32> to vector<8x8xf32>
    %68 = arith.mulf %63, %67 : vector<8x8xf32>
    %cst_23 = arith.constant dense<0.000000e+00> : vector<8x8xf32>
    %69 = tpu.matmul %68, %52, %cst_23 {dimension_numbers = #tpu.dot_dimension_numbers<[1], [0], [0], [1], [0, 0, 1, 1], [], []>} : vector<8x8xf32>, vector<8x8xf32>, vector<8x8xf32> -> vector<8x8xf32>
    %70 = vector.extract_strided_slice %9 {offsets = [0, 24], sizes = [8, 8], strides = [1, 1]} : vector<8x96xf32> to vector<8x8xf32>
    %71 = vector.extract_strided_slice %9 {offsets = [0, 56], sizes = [8, 8], strides = [1, 1]} : vector<8x96xf32> to vector<8x8xf32>
    %72 = vector.extract_strided_slice %9 {offsets = [0, 88], sizes = [8, 8], strides = [1, 1]} : vector<8x96xf32> to vector<8x8xf32>
    %73 = tpu.transpose %71, [1, 0] : vector<8x8xf32> -> vector<8x8xf32>
    %cst_24 = arith.constant dense<0.000000e+00> : vector<8x8xf32>
    %74 = tpu.matmul %70, %73, %cst_24 {dimension_numbers = #tpu.dot_dimension_numbers<[1], [0], [0], [1], [0, 0, 1, 1], [], []>} : vector<8x8xf32>, vector<8x8xf32>, vector<8x8xf32> -> vector<8x8xf32>
    %cst_25 = arith.constant 0.353553385 : f32
    %75 = vector.broadcast %cst_25 : f32 to vector<8x8xf32>
    %76 = arith.mulf %74, %75 : vector<8x8xf32>
    %77 = vector.broadcast %3 : vector<1x8xf32> to vector<8x8xf32>
    %78 = arith.addf %76, %77 : vector<8x8xf32>
    %cst_26 = arith.constant dense<0xFF800000> : vector<8xf32>
    %79 = vector.multi_reduction <maximumf>, %78, %cst_26 [1] : vector<8x8xf32> to vector<8xf32>
    %80 = vector.shape_cast %79 : vector<8xf32> to vector<8x1xf32>
    %81 = vector.broadcast %80 : vector<8x1xf32> to vector<8x8xf32>
    %82 = arith.subf %78, %81 : vector<8x8xf32>
    %83 = math.exp %82 : vector<8x8xf32>
    %cst_27 = arith.constant dense<0.000000e+00> : vector<8xf32>
    %84 = vector.multi_reduction <add>, %83, %cst_27 [1] : vector<8x8xf32> to vector<8xf32>
    %85 = vector.shape_cast %84 : vector<8xf32> to vector<8x1xf32>
    %86 = tpu.reciprocal %85 {approx = true} : vector<8x1xf32> -> vector<8x1xf32>
    %87 = vector.broadcast %86 : vector<8x1xf32> to vector<8x8xf32>
    %88 = arith.mulf %83, %87 : vector<8x8xf32>
    %cst_28 = arith.constant dense<0.000000e+00> : vector<8x8xf32>
    %89 = tpu.matmul %88, %72, %cst_28 {dimension_numbers = #tpu.dot_dimension_numbers<[1], [0], [0], [1], [0, 0, 1, 1], [], []>} : vector<8x8xf32>, vector<8x8xf32>, vector<8x8xf32> -> vector<8x8xf32>
    %90 = tpu.concatenate %29, %49, %69, %89 in 1 : vector<8x8xf32>, vector<8x8xf32>, vector<8x8xf32>, vector<8x8xf32> -> vector<8x32xf32>
    %91 = arith.truncf %90 : vector<8x32xf32> to vector<8x32xbf16>
    %c0_29 = arith.constant 0 : index
    %c0_30 = arith.constant 0 : index
    %92 = vector.load %arg5[%c0_29, %c0_30] : memref<32x128xbf16, #tpu.memory_space<vmem>>, vector<32x128xbf16>
    %cst_31 = arith.constant dense<0.000000e+00> : vector<8x128xf32>
    %93 = tpu.matmul %91, %92, %cst_31 {dimension_numbers = #tpu.dot_dimension_numbers<[1], [0], [0], [1], [0, 0, 1, 1], [], []>} : vector<8x32xbf16>, vector<32x128xbf16>, vector<8x128xf32> -> vector<8x128xf32>
    %c0_32 = arith.constant 0 : index
    %c0_33 = arith.constant 0 : index
    %94 = vector.load %arg6[%c0_32, %c0_33] : memref<1x128xf32, #tpu.memory_space<vmem>>, vector<1x128xf32>
    %95 = vector.broadcast %94 : vector<1x128xf32> to vector<8x128xf32>
    %96 = arith.addf %93, %95 : vector<8x128xf32>
    %97 = arith.addf %96, %1 : vector<8x128xf32>
    %c0_34 = arith.constant 0 : index
    %c0_35 = arith.constant 0 : index
    %98 = vector.load %arg7[%c0_34, %c0_35] : memref<1x128xf32, #tpu.memory_space<vmem>>, vector<1x128xf32>
    %c0_36 = arith.constant 0 : index
    %c0_37 = arith.constant 0 : index
    %99 = vector.load %arg8[%c0_36, %c0_37] : memref<1x128xf32, #tpu.memory_space<vmem>>, vector<1x128xf32>
    %100 = tpu.iota {dimensions = array<i32: 1>} : vector<8x128xi32>
    %c32_i32 = arith.constant 32 : i32
    %101 = vector.broadcast %c32_i32 : i32 to vector<8x128xi32>
    %102 = arith.cmpi slt, %100, %101 : vector<8x128xi32>
    %cst_38 = arith.constant dense<0.000000e+00> : vector<8xf32>
    %103 = vector.multi_reduction <add>, %97, %cst_38 [1] : vector<8x128xf32> to vector<8xf32>
    %104 = vector.shape_cast %103 : vector<8xf32> to vector<8x1xf32>
    %cst_39 = arith.constant 3.125000e-02 : f32
    %105 = vector.broadcast %cst_39 : f32 to vector<8x1xf32>
    %106 = arith.mulf %104, %105 : vector<8x1xf32>
    %107 = vector.broadcast %106 : vector<8x1xf32> to vector<8x128xf32>
    %108 = arith.subf %97, %107 : vector<8x128xf32>
    %cst_40 = arith.constant 0.000000e+00 : f32
    %109 = vector.broadcast %cst_40 : f32 to vector<8x128xf32>
    %110 = arith.select %102, %108, %109 : vector<8x128xi1>, vector<8x128xf32>
    %111 = arith.mulf %110, %110 : vector<8x128xf32>
    %cst_41 = arith.constant dense<0.000000e+00> : vector<8xf32>
    %112 = vector.multi_reduction <add>, %111, %cst_41 [1] : vector<8x128xf32> to vector<8xf32>
    %113 = vector.shape_cast %112 : vector<8xf32> to vector<8x1xf32>
    %cst_42 = arith.constant 3.125000e-02 : f32
    %114 = vector.broadcast %cst_42 : f32 to vector<8x1xf32>
    %115 = arith.mulf %113, %114 : vector<8x1xf32>
    %cst_43 = arith.constant 9.99999996E-13 : f32
    %116 = vector.broadcast %cst_43 : f32 to vector<8x1xf32>
    %117 = arith.addf %115, %116 : vector<8x1xf32>
    %118 = math.rsqrt %117 : vector<8x1xf32>
    %119 = vector.broadcast %118 : vector<8x1xf32> to vector<8x128xf32>
    %120 = arith.mulf %110, %119 : vector<8x128xf32>
    %121 = vector.broadcast %98 : vector<1x128xf32> to vector<8x128xf32>
    %122 = arith.mulf %120, %121 : vector<8x128xf32>
    %123 = vector.broadcast %99 : vector<1x128xf32> to vector<8x128xf32>
    %124 = arith.addf %122, %123 : vector<8x128xf32>
    %125 = arith.truncf %124 : vector<8x128xf32> to vector<8x128xbf16>
    %c0_44 = arith.constant 0 : index
    %c0_45 = arith.constant 0 : index
    %126 = vector.load %arg9[%c0_44, %c0_45] : memref<128x128xbf16, #tpu.memory_space<vmem>>, vector<128x128xbf16>
    %cst_46 = arith.constant dense<0.000000e+00> : vector<8x128xf32>
    %127 = tpu.matmul %125, %126, %cst_46 {dimension_numbers = #tpu.dot_dimension_numbers<[1], [0], [0], [1], [0, 0, 1, 1], [], []>} : vector<8x128xbf16>, vector<128x128xbf16>, vector<8x128xf32> -> vector<8x128xf32>
    %c0_47 = arith.constant 0 : index
    %c0_48 = arith.constant 0 : index
    %128 = vector.load %arg10[%c0_47, %c0_48] : memref<1x128xf32, #tpu.memory_space<vmem>>, vector<1x128xf32>
    %129 = vector.broadcast %128 : vector<1x128xf32> to vector<8x128xf32>
    %130 = arith.addf %127, %129 : vector<8x128xf32>
    %131 = arith.mulf %130, %130 : vector<8x128xf32>
    %132 = arith.mulf %130, %131 : vector<8x128xf32>
    %cst_49 = arith.constant 4.471500e-02 : f32
    %133 = vector.broadcast %cst_49 : f32 to vector<8x128xf32>
    %134 = arith.mulf %133, %132 : vector<8x128xf32>
    %135 = arith.addf %130, %134 : vector<8x128xf32>
    %cst_50 = arith.constant 0.797884583 : f32
    %136 = vector.broadcast %cst_50 : f32 to vector<8x128xf32>
    %137 = arith.mulf %136, %135 : vector<8x128xf32>
    %138 = math.tanh %137 : vector<8x128xf32>
    %cst_51 = arith.constant 1.000000e+00 : f32
    %139 = vector.broadcast %cst_51 : f32 to vector<8x128xf32>
    %140 = arith.addf %139, %138 : vector<8x128xf32>
    %cst_52 = arith.constant 5.000000e-01 : f32
    %141 = vector.broadcast %cst_52 : f32 to vector<8x128xf32>
    %142 = arith.mulf %141, %140 : vector<8x128xf32>
    %143 = arith.mulf %130, %142 : vector<8x128xf32>
    %144 = arith.truncf %143 : vector<8x128xf32> to vector<8x128xbf16>
    %c0_53 = arith.constant 0 : index
    %c0_54 = arith.constant 0 : index
    %145 = vector.load %arg11[%c0_53, %c0_54] : memref<128x128xbf16, #tpu.memory_space<vmem>>, vector<128x128xbf16>
    %cst_55 = arith.constant dense<0.000000e+00> : vector<8x128xf32>
    %146 = tpu.matmul %144, %145, %cst_55 {dimension_numbers = #tpu.dot_dimension_numbers<[1], [0], [0], [1], [0, 0, 1, 1], [], []>} : vector<8x128xbf16>, vector<128x128xbf16>, vector<8x128xf32> -> vector<8x128xf32>
    %c0_56 = arith.constant 0 : index
    %c0_57 = arith.constant 0 : index
    %147 = vector.load %arg12[%c0_56, %c0_57] : memref<1x128xf32, #tpu.memory_space<vmem>>, vector<1x128xf32>
    %148 = vector.broadcast %147 : vector<1x128xf32> to vector<8x128xf32>
    %149 = arith.addf %146, %148 : vector<8x128xf32>
    %150 = arith.addf %149, %124 : vector<8x128xf32>
    %c0_58 = arith.constant 0 : index
    %c0_59 = arith.constant 0 : index
    %151 = vector.load %arg13[%c0_58, %c0_59] : memref<1x128xf32, #tpu.memory_space<vmem>>, vector<1x128xf32>
    %c0_60 = arith.constant 0 : index
    %c0_61 = arith.constant 0 : index
    %152 = vector.load %arg14[%c0_60, %c0_61] : memref<1x128xf32, #tpu.memory_space<vmem>>, vector<1x128xf32>
    %153 = tpu.iota {dimensions = array<i32: 1>} : vector<8x128xi32>
    %c32_i32_62 = arith.constant 32 : i32
    %154 = vector.broadcast %c32_i32_62 : i32 to vector<8x128xi32>
    %155 = arith.cmpi slt, %153, %154 : vector<8x128xi32>
    %cst_63 = arith.constant dense<0.000000e+00> : vector<8xf32>
    %156 = vector.multi_reduction <add>, %150, %cst_63 [1] : vector<8x128xf32> to vector<8xf32>
    %157 = vector.shape_cast %156 : vector<8xf32> to vector<8x1xf32>
    %cst_64 = arith.constant 3.125000e-02 : f32
    %158 = vector.broadcast %cst_64 : f32 to vector<8x1xf32>
    %159 = arith.mulf %157, %158 : vector<8x1xf32>
    %160 = vector.broadcast %159 : vector<8x1xf32> to vector<8x128xf32>
    %161 = arith.subf %150, %160 : vector<8x128xf32>
    %cst_65 = arith.constant 0.000000e+00 : f32
    %162 = vector.broadcast %cst_65 : f32 to vector<8x128xf32>
    %163 = arith.select %155, %161, %162 : vector<8x128xi1>, vector<8x128xf32>
    %164 = arith.mulf %163, %163 : vector<8x128xf32>
    %cst_66 = arith.constant dense<0.000000e+00> : vector<8xf32>
    %165 = vector.multi_reduction <add>, %164, %cst_66 [1] : vector<8x128xf32> to vector<8xf32>
    %166 = vector.shape_cast %165 : vector<8xf32> to vector<8x1xf32>
    %cst_67 = arith.constant 3.125000e-02 : f32
    %167 = vector.broadcast %cst_67 : f32 to vector<8x1xf32>
    %168 = arith.mulf %166, %167 : vector<8x1xf32>
    %cst_68 = arith.constant 9.99999996E-13 : f32
    %169 = vector.broadcast %cst_68 : f32 to vector<8x1xf32>
    %170 = arith.addf %168, %169 : vector<8x1xf32>
    %171 = math.rsqrt %170 : vector<8x1xf32>
    %172 = vector.broadcast %171 : vector<8x1xf32> to vector<8x128xf32>
    %173 = arith.mulf %163, %172 : vector<8x128xf32>
    %174 = vector.broadcast %151 : vector<1x128xf32> to vector<8x128xf32>
    %175 = arith.mulf %173, %174 : vector<8x128xf32>
    %176 = vector.broadcast %152 : vector<1x128xf32> to vector<8x128xf32>
    %177 = arith.addf %175, %176 : vector<8x128xf32>
    %c0_69 = arith.constant 0 : index
    %c0_70 = arith.constant 0 : index
    %c0_71 = arith.constant 0 : index
    %178 = vector.load %arg15[%c0_69, %c0_70, %c0_71] : memref<1x8x128xf32, #tpu.memory_space<vmem>>, vector<1x8x128xf32>
    %179 = vector.shape_cast %178 : vector<1x8x128xf32> to vector<8x128xf32>
    %180 = vector.shape_cast %177 : vector<8x128xf32> to vector<1x8x128xf32>
    tpu.vector_store %arg15[%c0_69, %c0_70, %c0_71], %180 {strides = array<i32>} : memref<1x8x128xf32, #tpu.memory_space<vmem>>, vector<1x8x128xf32>,
    return
  }
  func.func @transform_0(%arg0: i32) -> (i32, i32, i32) {
    %c0_i32 = arith.constant 0 : i32
    %c0_i32_0 = arith.constant 0 : i32
    %c0_i32_1 = arith.constant 0 : i32
    return %arg0, %c0_i32, %c0_i32_0 : i32, i32, i32
  }
  func.func @transform_1(%arg0: i32) -> (i32, i32, i32) {
    %c0_i32 = arith.constant 0 : i32
    %c0_i32_0 = arith.constant 0 : i32
    %c0_i32_1 = arith.constant 0 : i32
    return %arg0, %c0_i32, %c0_i32_0 : i32, i32, i32
  }
  func.func @transform_2(%arg0: i32) -> (i32, i32) {
    %c0_i32 = arith.constant 0 : i32
    %c0_i32_0 = arith.constant 0 : i32
    %c0_i32_1 = arith.constant 0 : i32
    return %c0_i32, %c0_i32_0 : i32, i32
  }
  func.func @transform_3(%arg0: i32) -> (i32, i32) {
    %c0_i32 = arith.constant 0 : i32
    %c0_i32_0 = arith.constant 0 : i32
    %c0_i32_1 = arith.constant 0 : i32
    return %c0_i32, %c0_i32_0 : i32, i32
  }
  func.func @transform_4(%arg0: i32) -> (i32, i32) {
    %c0_i32 = arith.constant 0 : i32
    %c0_i32_0 = arith.constant 0 : i32
    %c0_i32_1 = arith.constant 0 : i32
    return %c0_i32, %c0_i32_0 : i32, i32
  }
  func.func @transform_5(%arg0: i32) -> (i32, i32) {
    %c0_i32 = arith.constant 0 : i32
    %c0_i32_0 = arith.constant 0 : i32
    %c0_i32_1 = arith.constant 0 : i32
    return %c0_i32, %c0_i32_0 : i32, i32
  }
  func.func @transform_6(%arg0: i32) -> (i32, i32) {
    %c0_i32 = arith.constant 0 : i32
    %c0_i32_0 = arith.constant 0 : i32
    %c0_i32_1 = arith.constant 0 : i32
    return %c0_i32, %c0_i32_0 : i32, i32
  }
  func.func @transform_7(%arg0: i32) -> (i32, i32) {
    %c0_i32 = arith.constant 0 : i32
    %c0_i32_0 = arith.constant 0 : i32
    %c0_i32_1 = arith.constant 0 : i32
    return %c0_i32, %c0_i32_0 : i32, i32
  }
  func.func @transform_8(%arg0: i32) -> (i32, i32) {
    %c0_i32 = arith.constant 0 : i32
    %c0_i32_0 = arith.constant 0 : i32
    %c0_i32_1 = arith.constant 0 : i32
    return %c0_i32, %c0_i32_0 : i32, i32
  }
  func.func @transform_9(%arg0: i32) -> (i32, i32) {
    %c0_i32 = arith.constant 0 : i32
    %c0_i32_0 = arith.constant 0 : i32
    %c0_i32_1 = arith.constant 0 : i32
    return %c0_i32, %c0_i32_0 : i32, i32
  }
  func.func @transform_10(%arg0: i32) -> (i32, i32) {
    %c0_i32 = arith.constant 0 : i32
    %c0_i32_0 = arith.constant 0 : i32
    %c0_i32_1 = arith.constant 0 : i32
    return %c0_i32, %c0_i32_0 : i32, i32
  }
  func.func @transform_11(%arg0: i32) -> (i32, i32) {
    %c0_i32 = arith.constant 0 : i32
    %c0_i32_0 = arith.constant 0 : i32
    %c0_i32_1 = arith.constant 0 : i32
    return %c0_i32, %c0_i32_0 : i32, i32
  }
  func.func @transform_12(%arg0: i32) -> (i32, i32) {
    %c0_i32 = arith.constant 0 : i32
    %c0_i32_0 = arith.constant 0 : i32
    %c0_i32_1 = arith.constant 0 : i32
    return %c0_i32, %c0_i32_0 : i32, i32
  }
  func.func @transform_13(%arg0: i32) -> (i32, i32) {
    %c0_i32 = arith.constant 0 : i32
    %c0_i32_0 = arith.constant 0 : i32
    %c0_i32_1 = arith.constant 0 : i32
    return %c0_i32, %c0_i32_0 : i32, i32
  }
  func.func @transform_14(%arg0: i32) -> (i32, i32, i32) {
    %c0_i32 = arith.constant 0 : i32
    %c0_i32_0 = arith.constant 0 : i32
    %c0_i32_1 = arith.constant 0 : i32
    return %arg0, %c0_i32, %c0_i32_0 : i32, i32, i32
  }
}

</mosaic_0001>

<llo_original>
// kernel: bert_classifier_forward.4
$region0: #{bert_classifier_forward.4}
  #allocation0 [shape = 'u32[]', space=smem, size = 0x4, offset = 0x4, fixed_abs, tag = 'smem constant byte address 0x4 - core index']
  #allocation1 [shape = 'u32[144,128]{1,0:T(1,128)}', space=vmem, size = 0x12000, scoped, tag = 'internal scratch']
  %s0 = inlined_call_operand.vmem [shape: f32[16,128], index: 0, kind: input, shape index: {}]
  %s1 = inlined_call_operand.vmem [shape: f32[1,128], index: 1, kind: input, shape index: {}]
  %s2 = inlined_call_operand.vmem [shape: f32[1,128], index: 2, kind: input, shape index: {}]
  %s3 = inlined_call_operand.vmem [shape: f32[16,128], index: 3, kind: output, shape index: {}]
  %s4 = sld [smem:[#allocation0]]
  $region22: #{bert_classifier_forward.4} parent=0
    _
  %s6 = ssub.s32 1, %s4
  %s7 = scalar_select 0, %s6, %s4
  // Predicated region
  $region2: #{bert_classifier_forward.4} parent=0 // pred_check
    _
  $region3: #{bert_classifier_forward.4} parent=0 // pred_check_branch
    %9 = sbr.rel (0) target = $region5
  $region4: #{bert_classifier_forward.4} parent=0 // pred_region
    _
  $region5: #{bert_classifier_forward.4} parent=0 // pred_fallthru
    _
  // Predicated region
  $region6: #{bert_classifier_forward.4} parent=0 // pred_check
    _
  $region7: #{bert_classifier_forward.4} parent=0 // pred_check_branch
    %11 = sbr.rel (0) target = $region9
  $region8: #{bert_classifier_forward.4} parent=0 // pred_region
    _
  $region9: #{bert_classifier_forward.4} parent=0 // pred_fallthru
    _
  // Predicated region
  $region10: #{bert_classifier_forward.4} parent=0 // pred_check
    _
  $region11: #{bert_classifier_forward.4} parent=0 // pred_check_branch
    %13 = sbr.rel (0) target = $region13
  $region12: #{bert_classifier_forward.4} parent=0 // pred_region
    _
  $region13: #{bert_classifier_forward.4} parent=0 // pred_fallthru
    _
  %v14 = vld [vmem:[%s0] sm:$0xff]
  %v15 = vld [vmem:[%s0 + $0x8] sm:$0xff]
  %v16 = vld [vmem:[%s1] sm:$0x1]
  %v17 = vld [vmem:[%s2] sm:$0x1]
  %v18 = vlaneseq
  %v19 = vand.u32 %v18, 127
  %vm20 = vcmp.lt.s32.totalorder %v19, 32
  %21 = vadd.xlane.f32.xlu0 %v14
  %v22 = vpop.xlane.xlu0 %21
  %23 = vadd.xlane.f32.xlu0 %v15
  %v24 = vpop.xlane.xlu0 %23
  %v25 = vmul.f32 %v22, 0.03125
  %v26 = vmul.f32 %v24, 0.03125
  %v27 = vsub.f32 %v14, %v25
  %v28 = vsub.f32 %v15, %v26
  %v29 = vsel %vm20, %v27, 0.0
  %v30 = vsel %vm20, %v28, 0.0
  %v31 = vmul.f32 %v29, %v29
  %v32 = vmul.f32 %v30, %v30
  %33 = vadd.xlane.f32.xlu0 %v31
  %v34 = vpop.xlane.xlu0 %33
  %35 = vadd.xlane.f32.xlu0 %v32
  %v36 = vpop.xlane.xlu0 %35
  %v37 = vmul.f32 %v34, 0.03125
  %v38 = vmul.f32 %v36, 0.03125
  %v39 = vadd.f32 %v37, 1e-12
  %v40 = vadd.f32 %v38, 1e-12
  %v41 = vrsqrt.pop %v39
  %v42 = vrsqrt.pop %v40
  %v43 = vmul.f32 %v29, %v41
  %v44 = vmul.f32 %v30, %v42
  %v46 = vlaneseq
  %v47 = vshrl.u32 %v46, 7
  %v48 = vsub.s32 0, %v47
  %v49 = vrot.slane %v16, %v48
  %v51 = vmul.f32 %v43, %v49
  %v52 = vmul.f32 %v44, %v49
  %v54 = vlaneseq
  %v55 = vshrl.u32 %v54, 7
  %v56 = vsub.s32 0, %v55
  %v57 = vrot.slane %v17, %v56
  %v59 = vadd.f32 %v51, %v57
  %v60 = vadd.f32 %v52, %v57
  %61 = vst [vmem:[%s3] sm:$0xff] %v59
  %62 = vst [vmem:[%s3 + $0x8] sm:$0xff] %v60
  // Predicated region
  $region14: #{bert_classifier_forward.4} parent=0 // pred_check
    _
  $region15: #{bert_classifier_forward.4} parent=0 // pred_check_branch
    %64 = sbr.rel (0) target = $region17
  $region16: #{bert_classifier_forward.4} parent=0 // pred_region
    _
  $region17: #{bert_classifier_forward.4} parent=0 // pred_fallthru
    _
  // Predicated region
  $region18: #{bert_classifier_forward.4} parent=0 // pred_check
    _
  $region19: #{bert_classifier_forward.4} parent=0 // pred_check_branch
    %66 = sbr.rel (0) target = $region21
  $region20: #{bert_classifier_forward.4} parent=0 // pred_region
    _
  $region21: #{bert_classifier_forward.4} parent=0 // pred_fallthru
    _

// kernel: bert_classifier_forward.7
$region0: #{bert_classifier_forward.7}
  #allocation0 [shape = 'u32[]', space=smem, size = 0x4, offset = 0x4, fixed_abs, tag = 'smem constant byte address 0x4 - core index']
  #allocation1 [shape = 'u32[144,128]{1,0:T(1,128)}', space=vmem, size = 0x12000, scoped, tag = 'internal scratch']
  %s0 = inlined_call_operand.vmem [shape: f32[2,128], index: 0, kind: input, shape index: {}]
  %s1 = inlined_call_operand.vmem [shape: bf16[128,128], index: 1, kind: input, shape index: {}]
  %s2 = inlined_call_operand.vmem [shape: f32[1,128], index: 2, kind: input, shape index: {}]
  %s3 = inlined_call_operand.vmem [shape: bf16[128,128], index: 3, kind: input, shape index: {}]
  %s4 = inlined_call_operand.vmem [shape: f32[1,128], index: 4, kind: input, shape index: {}]
  %s5 = inlined_call_operand.hbm [shape: f32[2,128], index: 5, kind: output, shape index: {}]
  %s6 = sld [smem:[#allocation0]]
  $region30: #{bert_classifier_forward.7} parent=0
    _
  %s8 = ssub.s32 1, %s6
  %s9 = scalar_select 0, %s8, %s6
  $region1: #{bert_classifier_forward.7} parent=0
    #allocation2 [shape = 'u8[1024]{0}', space=vmem, size = 0x400, scoped, tag = 'output window, operand 0, single buffered']
    #allocation3 [shape = 's32[1]{0}', space=sflag, size = 0x4, scoped, tag = 'scoped memory for bert_classifier_forward.7']
    %10 = vsyncpa [#allocation3], 0
    // Predicated region
    $region2: #{bert_classifier_forward.7} parent=1 // pred_check
      _
    $region3: #{bert_classifier_forward.7} parent=1 // pred_check_branch
      %12 = sbr.rel (0) target = $region5
    $region4: #{bert_classifier_forward.7} parent=1 // pred_region
      _
    $region5: #{bert_classifier_forward.7} parent=1 // pred_fallthru
      _
    // Predicated region
    $region6: #{bert_classifier_forward.7} parent=1 // pred_check
      _
    $region7: #{bert_classifier_forward.7} parent=1 // pred_check_branch
      %14 = sbr.rel (0) target = $region9
    $region8: #{bert_classifier_forward.7} parent=1 // pred_region
      _
    $region9: #{bert_classifier_forward.7} parent=1 // pred_fallthru
      _
    // Predicated region
    $region10: #{bert_classifier_forward.7} parent=1 // pred_check
      _
    $region11: #{bert_classifier_forward.7} parent=1 // pred_check_branch
      %16 = sbr.rel (0) target = $region13
    $region12: #{bert_classifier_forward.7} parent=1 // pred_region
      _
    $region13: #{bert_classifier_forward.7} parent=1 // pred_fallthru
      _
    // Predicated region
    $region14: #{bert_classifier_forward.7} parent=1 // pred_check
      _
    $region15: #{bert_classifier_forward.7} parent=1 // pred_check_branch
      %18 = sbr.rel (0) target = $region17
    $region16: #{bert_classifier_forward.7} parent=1 // pred_region
      _
    $region17: #{bert_classifier_forward.7} parent=1 // pred_fallthru
      _
    // Predicated region
    $region18: #{bert_classifier_forward.7} parent=1 // pred_check
      _
    $region19: #{bert_classifier_forward.7} parent=1 // pred_check_branch
      %20 = sbr.rel (0) target = $region21
    $region20: #{bert_classifier_forward.7} parent=1 // pred_region
      _
    $region21: #{bert_classifier_forward.7} parent=1 // pred_fallthru
      _
    %v22 = vld [vmem:[%s0] sm:$0x3]
    %v23 = vpack.c.bf16 %v22, %v22
    %v24 = vld [vmem:[%s1] sm:$0xf]
    %v25 = vld [vmem:[%s1 + $0x4] sm:$0xf]
    %v26 = vld [vmem:[%s1 + $0x8] sm:$0xf]
    %v27 = vld [vmem:[%s1 + $0xc] sm:$0xf]
    %v28 = vld [vmem:[%s1 + $0x10] sm:$0xf]
    %v29 = vld [vmem:[%s1 + $0x14] sm:$0xf]
    %v30 = vld [vmem:[%s1 + $0x18] sm:$0xf]
    %v31 = vld [vmem:[%s1 + $0x1c] sm:$0xf]
    %v32 = vld [vmem:[%s1 + $0x20] sm:$0xf]
    %v33 = vld [vmem:[%s1 + $0x24] sm:$0xf]
    %v34 = vld [vmem:[%s1 + $0x28] sm:$0xf]
    %v35 = vld [vmem:[%s1 + $0x2c] sm:$0xf]
    %v36 = vld [vmem:[%s1 + $0x30] sm:$0xf]
    %v37 = vld [vmem:[%s1 + $0x34] sm:$0xf]
    %v38 = vld [vmem:[%s1 + $0x38] sm:$0xf]
    %v39 = vld [vmem:[%s1 + $0x3c] sm:$0xf]
    %v40 = vld [vmem:[%s2] sm:$0x1]
    %v42 = vlaneseq
    %v43 = vshrl.u32 %v42, 7
    %v44 = vsub.s32 0, %v43
    %v45 = vrot.slane %v40, %v44
    %v63 = vunpack.c.l.b16 %v24
    %v64 = vunpack.c.l.b16 %v25
    %v65 = vunpack.c.l.b16 %v26
    %v66 = vunpack.c.l.b16 %v27
    %v67 = vunpack.c.l.b16 %v28
    %v68 = vunpack.c.l.b16 %v29
    %v69 = vunpack.c.l.b16 %v30
    %v70 = vunpack.c.l.b16 %v31
    %v71 = vunpack.c.l.b16 %v32
    %v72 = vunpack.c.l.b16 %v33
    %v73 = vunpack.c.l.b16 %v34
    %v74 = vunpack.c.l.b16 %v35
    %v75 = vunpack.c.l.b16 %v36
    %v76 = vunpack.c.l.b16 %v37
    %v77 = vunpack.c.l.b16 %v38
    %v78 = vunpack.c.l.b16 %v39
    %v79 = vpack.c.b16 %v64, %v63
    %v80 = vpack.c.b16 %v66, %v65
    %v81 = vpack.c.b16 %v68, %v67
    %v82 = vpack.c.b16 %v70, %v69
    %v83 = vpack.c.b16 %v72, %v71
    %v84 = vpack.c.b16 %v74, %v73
    %v85 = vpack.c.b16 %v76, %v75
    %v86 = vpack.c.b16 %v78, %v77
    %95 = vmatprep.subr.bf16.mxu0 0
    %96 = vmatpush1.bf16.msra.mxu0 %v86
    %97 = vmatprep.subr.bf16.mxu0 0
    %98 = vmatpush1.bf16.msra.mxu0 %v85
    %99 = vmatprep.subr.bf16.mxu0 0
    %100 = vmatpush1.bf16.msra.mxu0 %v84
    %101 = vmatprep.subr.bf16.mxu0 0
    %102 = vmatpush1.bf16.msra.mxu0 %v83
    %103 = vmatprep.subr.bf16.mxu0 0
    %104 = vmatpush1.bf16.msra.mxu0 %v82
    %105 = vmatprep.subr.bf16.mxu0 0
    %106 = vmatpush1.bf16.msra.mxu0 %v81
    %107 = vmatprep.subr.bf16.mxu0 0
    %108 = vmatpush1.bf16.msra.mxu0 %v80
    %109 = vmatprep.subr.bf16.mxu0 0
    %110 = vmatpush1.bf16.msra.mxu0 %v79
    %111 = vmatprep.subr.bf16.mxu0 0
    %112 = vmatpush2.bf16.msra.mxu0 0
    %113 = vmatprep.subr.bf16.mxu0 0
    %114 = vmatpush2.bf16.msra.mxu0 0
    %115 = vmatprep.subr.bf16.mxu0 0
    %116 = vmatpush2.bf16.msra.mxu0 0
    %117 = vmatprep.subr.bf16.mxu0 0
    %118 = vmatpush2.bf16.msra.mxu0 0
    %119 = vmatprep.subr.bf16.mxu0 0
    %120 = vmatpush2.bf16.msra.mxu0 0
    %121 = vmatprep.subr.bf16.mxu0 0
    %122 = vmatpush2.bf16.msra.mxu0 0
    %123 = vmatprep.subr.bf16.mxu0 0
    %124 = vmatpush2.bf16.msra.mxu0 0
    %125 = vmatprep.subr.bf16.mxu0 0
    %126 = vmatpush2.bf16.msra.mxu0 0
    %127 = vmatprep.mubr.bf16.mxu0 0
    %128 = vmatmul.mubr.bf16.gmra.mxu0 %v23
    %v129 = vpop.f32.mrf.mxu0
    %v130 = vadd.f32 %v45, %v129
    %v131 = vpop.f32.mrf.mxu0
    %v132 = vpop.f32.mrf.mxu0
    %v133 = vpop.f32.mrf.mxu0
    %134 = vdwg.mxu0
    %v135 = vtanh.pop %v130
    %v136 = vpack.c.bf16 %v135, %v135
    %v137 = vld [vmem:[%s3] sm:$0xf]
    %v138 = vld [vmem:[%s3 + $0x4] sm:$0xf]
    %v139 = vld [vmem:[%s3 + $0x8] sm:$0xf]
    %v140 = vld [vmem:[%s3 + $0xc] sm:$0xf]
    %v141 = vld [vmem:[%s3 + $0x10] sm:$0xf]
    %v142 = vld [vmem:[%s3 + $0x14] sm:$0xf]
    %v143 = vld [vmem:[%s3 + $0x18] sm:$0xf]
    %v144 = vld [vmem:[%s3 + $0x1c] sm:$0xf]
    %v145 = vld [vmem:[%s3 + $0x20] sm:$0xf]
    %v146 = vld [vmem:[%s3 + $0x24] sm:$0xf]
    %v147 = vld [vmem:[%s3 + $0x28] sm:$0xf]
    %v148 = vld [vmem:[%s3 + $0x2c] sm:$0xf]
    %v149 = vld [vmem:[%s3 + $0x30] sm:$0xf]
    %v150 = vld [vmem:[%s3 + $0x34] sm:$0xf]
    %v151 = vld [vmem:[%s3 + $0x38] sm:$0xf]
    %v152 = vld [vmem:[%s3 + $0x3c] sm:$0xf]
    %v153 = vld [vmem:[%s4] sm:$0x1]
    %v155 = vlaneseq
    %v156 = vshrl.u32 %v155, 7
    %v157 = vsub.s32 0, %v156
    %v158 = vrot.slane %v153, %v157
    %v176 = vunpack.c.l.b16 %v137
    %v177 = vunpack.c.l.b16 %v138
    %v178 = vunpack.c.l.b16 %v139
    %v179 = vunpack.c.l.b16 %v140
    %v180 = vunpack.c.l.b16 %v141
    %v181 = vunpack.c.l.b16 %v142
    %v182 = vunpack.c.l.b16 %v143
    %v183 = vunpack.c.l.b16 %v144
    %v184 = vunpack.c.l.b16 %v145
    %v185 = vunpack.c.l.b16 %v146
    %v186 = vunpack.c.l.b16 %v147
    %v187 = vunpack.c.l.b16 %v148
    %v188 = vunpack.c.l.b16 %v149
    %v189 = vunpack.c.l.b16 %v150
    %v190 = vunpack.c.l.b16 %v151
    %v191 = vunpack.c.l.b16 %v152
    %v192 = vpack.c.b16 %v177, %v176
    %v193 = vpack.c.b16 %v179, %v178
    %v194 = vpack.c.b16 %v181, %v180
    %v195 = vpack.c.b16 %v183, %v182
    %v196 = vpack.c.b16 %v185, %v184
    %v197 = vpack.c.b16 %v187, %v186
    %v198 = vpack.c.b16 %v189, %v188
    %v199 = vpack.c.b16 %v191, %v190
    %208 = vmatprep.subr.bf16.mxu0 0
    %209 = vmatpush1.bf16.msra.mxu0 %v199
    %210 = vmatprep.subr.bf16.mxu0 0
    %211 = vmatpush1.bf16.msra.mxu0 %v198
    %212 = vmatprep.subr.bf16.mxu0 0
    %213 = vmatpush1.bf16.msra.mxu0 %v197
    %214 = vmatprep.subr.bf16.mxu0 0
    %215 = vmatpush1.bf16.msra.mxu0 %v196
    %216 = vmatprep.subr.bf16.mxu0 0
    %217 = vmatpush1.bf16.msra.mxu0 %v195
    %218 = vmatprep.subr.bf16.mxu0 0
    %219 = vmatpush1.bf16.msra.mxu0 %v194
    %220 = vmatprep.subr.bf16.mxu0 0
    %221 = vmatpush1.bf16.msra.mxu0 %v193
    %222 = vmatprep.subr.bf16.mxu0 0
    %223 = vmatpush1.bf16.msra.mxu0 %v192
    %224 = vmatprep.subr.bf16.mxu0 0
    %225 = vmatpush2.bf16.msra.mxu0 0
    %226 = vmatprep.subr.bf16.mxu0 0
    %227 = vmatpush2.bf16.msra.mxu0 0
    %228 = vmatprep.subr.bf16.mxu0 0
    %229 = vmatpush2.bf16.msra.mxu0 0
    %230 = vmatprep.subr.bf16.mxu0 0
    %231 = vmatpush2.bf16.msra.mxu0 0
    %232 = vmatprep.subr.bf16.mxu0 0
    %233 = vmatpush2.bf16.msra.mxu0 0
    %234 = vmatprep.subr.bf16.mxu0 0
    %235 = vmatpush2.bf16.msra.mxu0 0
    %236 = vmatprep.subr.bf16.mxu0 0
    %237 = vmatpush2.bf16.msra.mxu0 0
    %238 = vmatprep.subr.bf16.mxu0 0
    %239 = vmatpush2.bf16.msra.mxu0 0
    %240 = vmatprep.mubr.bf16.mxu0 0
    %241 = vmatmul.mubr.bf16.gmra.mxu0 %v136
    %v242 = vpop.f32.mrf.mxu0
    %v243 = vadd.f32 %v158, %v242
    %v244 = vpop.f32.mrf.mxu0
    %v245 = vpop.f32.mrf.mxu0
    %v246 = vpop.f32.mrf.mxu0
    %247 = vdwg.mxu0
    %248 = vst [vmem:[#allocation2] sm:$0x3] %v243
    // Predicated region
    $region22: #{bert_classifier_forward.7} parent=1 // pred_check
      _
    $region23: #{bert_classifier_forward.7} parent=1 // pred_check_branch
      %250 = sbr.rel (0) target = $region25
    $region24: #{bert_classifier_forward.7} parent=1 // pred_region
      %s252 = ssub.s32 32, 32
      %253 = vsyncadd [#allocation3], %s252
      %s255 = sshll.u32 [#allocation2], 4
      %s256 = int_to_ptr.vmem [resolvable:$true] %s255
      %258 = dma.vmem_to_hbm [thread:$0]  %s256, 32, %s5, [#allocation3]
    $region25: #{bert_classifier_forward.7} parent=1 // pred_fallthru
      _
    // Predicated region
    $region26: #{bert_classifier_forward.7} parent=1 // pred_check
      _
    $region27: #{bert_classifier_forward.7} parent=1 // pred_check_branch
      %260 = sbr.rel (0) target = $region29
    $region28: #{bert_classifier_forward.7} parent=1 // pred_region
      %261 = dma.done [#allocation3], 32
    $region29: #{bert_classifier_forward.7} parent=1 // pred_fallthru
      _
    %262 = vsyncpa [#allocation3], 1

// kernel: bert_classifier_forward.5
$region0: #{bert_classifier_forward.5}
  #allocation0 [shape = 'u32[]', space=smem, size = 0x4, offset = 0x4, fixed_abs, tag = 'smem constant byte address 0x4 - core index']
  #allocation1 [shape = 'u32[144,128]{1,0:T(1,128)}', space=vmem, size = 0x12000, scoped, tag = 'internal scratch']
  %s0 = inlined_call_operand.vmem [shape: f32[2,8,128], index: 0, kind: input, shape index: {}]
  %s1 = inlined_call_operand.vmem [shape: f32[2,1,8], index: 1, kind: input, shape index: {}]
  %s2 = inlined_call_operand.vmem [shape: bf16[128,96], index: 2, kind: input, shape index: {}]
  %s3 = inlined_call_operand.vmem [shape: f32[1,96], index: 3, kind: input, shape index: {}]
  %s4 = inlined_call_operand.vmem [shape: bf16[32,128], index: 4, kind: input, shape index: {}]
  %s5 = inlined_call_operand.vmem [shape: f32[1,128], index: 5, kind: input, shape index: {}]
  %s6 = inlined_call_operand.vmem [shape: f32[1,128], index: 6, kind: input, shape index: {}]
  %s7 = inlined_call_operand.vmem [shape: f32[1,128], index: 7, kind: input, shape index: {}]
  %s8 = inlined_call_operand.vmem [shape: bf16[128,128], index: 8, kind: input, shape index: {}]
  %s9 = inlined_call_operand.vmem [shape: f32[1,128], index: 9, kind: input, shape index: {}]
  %s10 = inlined_call_operand.vmem [shape: bf16[128,128], index: 10, kind: input, shape index: {}]
  %s11 = inlined_call_operand.vmem [shape: f32[1,128], index: 11, kind: input, shape index: {}]
  %s12 = inlined_call_operand.vmem [shape: f32[1,128], index: 12, kind: input, shape index: {}]
  %s13 = inlined_call_operand.vmem [shape: f32[1,128], index: 13, kind: input, shape index: {}]
  %s14 = inlined_call_operand.vmem [shape: f32[2,8,128], index: 14, kind: output, shape index: {}]
  %s15 = sld [smem:[#allocation0]]
  $region89: #{bert_classifier_forward.5} parent=0
    _
  %s17 = ssub.s32 1, %s15
  %s18 = scalar_select 0, %s17, %s15
  loop: start=0, step=1, limit=4
  $region2: #{bert_classifier_forward.5} parent=0 // loop_pre_header
    _
  $region3: #{bert_classifier_forward.5} parent=0 // loop_header
    %s20 = sphi 0, %s24
    %p21 = scmp.ge.s32.totalorder %s20, 4
    %s30 = sphi 0, %s32
    %s33 = sphi 0, %s30
    %s34 = sphi 0, %s33
    %s50 = sphi 0, %s34
    %s56 = sphi 0, %s58
    %s59 = sphi 0, %s56
    %s60 = sphi 0, %s59
    %s76 = sphi 0, %s60
    %s80 = sphi 0, %s80
    %s82 = sphi 0, %s80
    %s83 = sphi 0, %s82
    %s97 = sphi 0, %s83
    %s101 = sphi 0, %s101
    %s103 = sphi 0, %s101
    %s104 = sphi 0, %s103
    %s118 = sphi 0, %s104
    %s122 = sphi 0, %s122
    %s124 = sphi 0, %s122
    %s125 = sphi 0, %s124
    %s139 = sphi 0, %s125
    %s143 = sphi 0, %s143
    %s145 = sphi 0, %s143
    %s146 = sphi 0, %s145
    %s160 = sphi 0, %s146
    %s164 = sphi 0, %s164
    %s166 = sphi 0, %s164
    %s167 = sphi 0, %s166
    %s181 = sphi 0, %s167
    %s185 = sphi 0, %s185
    %s187 = sphi 0, %s185
    %s188 = sphi 0, %s187
    %s202 = sphi 0, %s188
    %s206 = sphi 0, %s206
    %s208 = sphi 0, %s206
    %s209 = sphi 0, %s208
    %s223 = sphi 0, %s209
    %s227 = sphi 0, %s227
    %s229 = sphi 0, %s227
    %s230 = sphi 0, %s229
    %s244 = sphi 0, %s230
    %s248 = sphi 0, %s248
    %s250 = sphi 0, %s248
    %s251 = sphi 0, %s250
    %s265 = sphi 0, %s251
    %s269 = sphi 0, %s269
    %s271 = sphi 0, %s269
    %s272 = sphi 0, %s271
    %s286 = sphi 0, %s272
    %s290 = sphi 0, %s290
    %s292 = sphi 0, %s290
    %s293 = sphi 0, %s292
    %s307 = sphi 0, %s293
    %s311 = sphi 0, %s311
    %s313 = sphi 0, %s311
    %s314 = sphi 0, %s313
    %s328 = sphi 0, %s314
    %s334 = sphi 0, %s336
    %s337 = sphi 0, %s334
    %s338 = sphi 0, %s337
    %s354 = sphi 0, %s338
  $region4: #{bert_classifier_forward.5} parent=0 // loop_header_branch
    %23 = sbr.rel (%p21) target = $region8
  $region5: #{bert_classifier_forward.5} parent=0 // loop_body
    %s25 = ssub.s32 %s20, 1
    %s26 = ssub.s32 %s20, 2
    %s27 = sadd.s32 %s20, 1
    %s28 = ssub.s32 %s20, %s27
    %p29 = scmp.eq.s32.totalorder %s28, 0
    %s31 = sadd.s32 %s30, 1
    %s32 = scalar_select %p29, %s30, %s31
    %p35 = pneg %p29
    %p36 = scmp.eq.s32.totalorder %s20, 1
    %p37 = por %p35, %p36
    %p38 = scmp.ne.s32.totalorder %s30, %s33
    %p39 = scmp.eq.s32.totalorder %s20, 0
    %p40 = por %p38, %p39
    %p41 = scmp.ne.s32.totalorder %s30, %s33
    %p42 = scmp.eq.s32.totalorder %s25, 1
    %p43 = por %p41, %p42
    %p44 = scmp.ne.s32.totalorder %s33, %s34
    %p45 = scmp.eq.s32.totalorder %s25, 0
    %p46 = por %p44, %p45
    %p47 = scmp.ne.s32.totalorder %s33, %s34
    %p48 = scmp.eq.s32.totalorder %s26, 1
    %p49 = por %p47, %p48
    %p51 = scmp.ne.s32.totalorder %s34, %s50
    %p52 = scmp.eq.s32.totalorder %s26, 0
    %p53 = por %p51, %p52
    %s54 = ssub.s32 %s20, %s27
    %p55 = scmp.eq.s32.totalorder %s54, 0
    %s57 = sadd.s32 %s56, 1
    %s58 = scalar_select %p55, %s56, %s57
    %p61 = pneg %p55
    %p62 = scmp.eq.s32.totalorder %s20, 1
    %p63 = por %p61, %p62
    %p64 = scmp.ne.s32.totalorder %s56, %s59
    %p65 = scmp.eq.s32.totalorder %s20, 0
    %p66 = por %p64, %p65
    %p67 = scmp.ne.s32.totalorder %s56, %s59
    %p68 = scmp.eq.s32.totalorder %s25, 1
    %p69 = por %p67, %p68
    %p70 = scmp.ne.s32.totalorder %s59, %s60
    %p71 = scmp.eq.s32.totalorder %s25, 0
    %p72 = por %p70, %p71
    %p73 = scmp.ne.s32.totalorder %s59, %s60
    %p74 = scmp.eq.s32.totalorder %s26, 1
    %p75 = por %p73, %p74
    %p77 = scmp.ne.s32.totalorder %s60, %s76
    %p78 = scmp.eq.s32.totalorder %s26, 0
    %p79 = por %p77, %p78
    %s81 = sadd.s32 %s80, 1
    %p84 = scmp.eq.s32.totalorder %s20, 1
    %p85 = scmp.ne.s32.totalorder %s80, %s82
    %p86 = scmp.eq.s32.totalorder %s20, 0
    %p87 = por %p85, %p86
    %p88 = scmp.ne.s32.totalorder %s80, %s82
    %p89 = scmp.eq.s32.totalorder %s25, 1
    %p90 = por %p88, %p89
    %p91 = scmp.ne.s32.totalorder %s82, %s83
    %p92 = scmp.eq.s32.totalorder %s25, 0
    %p93 = por %p91, %p92
    %p94 = scmp.ne.s32.totalorder %s82, %s83
    %p95 = scmp.eq.s32.totalorder %s26, 1
    %p96 = por %p94, %p95
    %p98 = scmp.ne.s32.totalorder %s83, %s97
    %p99 = scmp.eq.s32.totalorder %s26, 0
    %p100 = por %p98, %p99
    %s102 = sadd.s32 %s101, 1
    %p105 = scmp.eq.s32.totalorder %s20, 1
    %p106 = scmp.ne.s32.totalorder %s101, %s103
    %p107 = scmp.eq.s32.totalorder %s20, 0
    %p108 = por %p106, %p107
    %p109 = scmp.ne.s32.totalorder %s101, %s103
    %p110 = scmp.eq.s32.totalorder %s25, 1
    %p111 = por %p109, %p110
    %p112 = scmp.ne.s32.totalorder %s103, %s104
    %p113 = scmp.eq.s32.totalorder %s25, 0
    %p114 = por %p112, %p113
    %p115 = scmp.ne.s32.totalorder %s103, %s104
    %p116 = scmp.eq.s32.totalorder %s26, 1
    %p117 = por %p115, %p116
    %p119 = scmp.ne.s32.totalorder %s104, %s118
    %p120 = scmp.eq.s32.totalorder %s26, 0
    %p121 = por %p119, %p120
    %s123 = sadd.s32 %s122, 1
    %p126 = scmp.eq.s32.totalorder %s20, 1
    %p127 = scmp.ne.s32.totalorder %s122, %s124
    %p128 = scmp.eq.s32.totalorder %s20, 0
    %p129 = por %p127, %p128
    %p130 = scmp.ne.s32.totalorder %s122, %s124
    %p131 = scmp.eq.s32.totalorder %s25, 1
    %p132 = por %p130, %p131
    %p133 = scmp.ne.s32.totalorder %s124, %s125
    %p134 = scmp.eq.s32.totalorder %s25, 0
    %p135 = por %p133, %p134
    %p136 = scmp.ne.s32.totalorder %s124, %s125
    %p137 = scmp.eq.s32.totalorder %s26, 1
    %p138 = por %p136, %p137
    %p140 = scmp.ne.s32.totalorder %s125, %s139
    %p141 = scmp.eq.s32.totalorder %s26, 0
    %p142 = por %p140, %p141
    %s144 = sadd.s32 %s143, 1
    %p147 = scmp.eq.s32.totalorder %s20, 1
    %p148 = scmp.ne.s32.totalorder %s143, %s145
    %p149 = scmp.eq.s32.totalorder %s20, 0
    %p150 = por %p148, %p149
    %p151 = scmp.ne.s32.totalorder %s143, %s145
    %p152 = scmp.eq.s32.totalorder %s25, 1
    %p153 = por %p151, %p152
    %p154 = scmp.ne.s32.totalorder %s145, %s146
    %p155 = scmp.eq.s32.totalorder %s25, 0
    %p156 = por %p154, %p155
    %p157 = scmp.ne.s32.totalorder %s145, %s146
    %p158 = scmp.eq.s32.totalorder %s26, 1
    %p159 = por %p157, %p158
    %p161 = scmp.ne.s32.totalorder %s146, %s160
    %p162 = scmp.eq.s32.totalorder %s26, 0
    %p163 = por %p161, %p162
    %s165 = sadd.s32 %s164, 1
    %p168 = scmp.eq.s32.totalorder %s20, 1
    %p169 = scmp.ne.s32.totalorder %s164, %s166
    %p170 = scmp.eq.s32.totalorder %s20, 0
    %p171 = por %p169, %p170
    %p172 = scmp.ne.s32.totalorder %s164, %s166
    %p173 = scmp.eq.s32.totalorder %s25, 1
    %p174 = por %p172, %p173
    %p175 = scmp.ne.s32.totalorder %s166, %s167
    %p176 = scmp.eq.s32.totalorder %s25, 0
    %p177 = por %p175, %p176
    %p178 = scmp.ne.s32.totalorder %s166, %s167
    %p179 = scmp.eq.s32.totalorder %s26, 1
    %p180 = por %p178, %p179
    %p182 = scmp.ne.s32.totalorder %s167, %s181
    %p183 = scmp.eq.s32.totalorder %s26, 0
    %p184 = por %p182, %p183
    %s186 = sadd.s32 %s185, 1
    %p189 = scmp.eq.s32.totalorder %s20, 1
    %p190 = scmp.ne.s32.totalorder %s185, %s187
    %p191 = scmp.eq.s32.totalorder %s20, 0
    %p192 = por %p190, %p191
    %p193 = scmp.ne.s32.totalorder %s185, %s187
    %p194 = scmp.eq.s32.totalorder %s25, 1
    %p195 = por %p193, %p194
    %p196 = scmp.ne.s32.totalorder %s187, %s188
    %p197 = scmp.eq.s32.totalorder %s25, 0
    %p198 = por %p196, %p197
    %p199 = scmp.ne.s32.totalorder %s187, %s188
    %p200 = scmp.eq.s32.totalorder %s26, 1
    %p201 = por %p199, %p200
    %p203 = scmp.ne.s32.totalorder %s188, %s202
    %p204 = scmp.eq.s32.totalorder %s26, 0
    %p205 = por %p203, %p204
    %s207 = sadd.s32 %s206, 1
    %p210 = scmp.eq.s32.totalorder %s20, 1
    %p211 = scmp.ne.s32.totalorder %s206, %s208
    %p212 = scmp.eq.s32.totalorder %s20, 0
    %p213 = por %p211, %p212
    %p214 = scmp.ne.s32.totalorder %s206, %s208
    %p215 = scmp.eq.s32.totalorder %s25, 1
    %p216 = por %p214, %p215
    %p217 = scmp.ne.s32.totalorder %s208, %s209
    %p218 = scmp.eq.s32.totalorder %s25, 0
    %p219 = por %p217, %p218
    %p220 = scmp.ne.s32.totalorder %s208, %s209
    %p221 = scmp.eq.s32.totalorder %s26, 1
    %p222 = por %p220, %p221
    %p224 = scmp.ne.s32.totalorder %s209, %s223
    %p225 = scmp.eq.s32.totalorder %s26, 0
    %p226 = por %p224, %p225
    %s228 = sadd.s32 %s227, 1
    %p231 = scmp.eq.s32.totalorder %s20, 1
    %p232 = scmp.ne.s32.totalorder %s227, %s229
    %p233 = scmp.eq.s32.totalorder %s20, 0
    %p234 = por %p232, %p233
    %p235 = scmp.ne.s32.totalorder %s227, %s229
    %p236 = scmp.eq.s32.totalorder %s25, 1
    %p237 = por %p235, %p236
    %p238 = scmp.ne.s32.totalorder %s229, %s230
    %p239 = scmp.eq.s32.totalorder %s25, 0
    %p240 = por %p238, %p239
    %p241 = scmp.ne.s32.totalorder %s229, %s230
    %p242 = scmp.eq.s32.totalorder %s26, 1
    %p243 = por %p241, %p242
    %p245 = scmp.ne.s32.totalorder %s230, %s244
    %p246 = scmp.eq.s32.totalorder %s26, 0
    %p247 = por %p245, %p246
    %s249 = sadd.s32 %s248, 1
    %p252 = scmp.eq.s32.totalorder %s20, 1
    %p253 = scmp.ne.s32.totalorder %s248, %s250
    %p254 = scmp.eq.s32.totalorder %s20, 0
    %p255 = por %p253, %p254
    %p256 = scmp.ne.s32.totalorder %s248, %s250
    %p257 = scmp.eq.s32.totalorder %s25, 1
    %p258 = por %p256, %p257
    %p259 = scmp.ne.s32.totalorder %s250, %s251
    %p260 = scmp.eq.s32.totalorder %s25, 0
    %p261 = por %p259, %p260
    %p262 = scmp.ne.s32.totalorder %s250, %s251
    %p263 = scmp.eq.s32.totalorder %s26, 1
    %p264 = por %p262, %p263
    %p266 = scmp.ne.s32.totalorder %s251, %s265
    %p267 = scmp.eq.s32.totalorder %s26, 0
    %p268 = por %p266, %p267
    %s270 = sadd.s32 %s269, 1
    %p273 = scmp.eq.s32.totalorder %s20, 1
    %p274 = scmp.ne.s32.totalorder %s269, %s271
    %p275 = scmp.eq.s32.totalorder %s20, 0
    %p276 = por %p274, %p275
    %p277 = scmp.ne.s32.totalorder %s269, %s271
    %p278 = scmp.eq.s32.totalorder %s25, 1
    %p279 = por %p277, %p278
    %p280 = scmp.ne.s32.totalorder %s271, %s272
    %p281 = scmp.eq.s32.totalorder %s25, 0
    %p282 = por %p280, %p281
    %p283 = scmp.ne.s32.totalorder %s271, %s272
    %p284 = scmp.eq.s32.totalorder %s26, 1
    %p285 = por %p283, %p284
    %p287 = scmp.ne.s32.totalorder %s272, %s286
    %p288 = scmp.eq.s32.totalorder %s26, 0
    %p289 = por %p287, %p288
    %s291 = sadd.s32 %s290, 1
    %p294 = scmp.eq.s32.totalorder %s20, 1
    %p295 = scmp.ne.s32.totalorder %s290, %s292
    %p296 = scmp.eq.s32.totalorder %s20, 0
    %p297 = por %p295, %p296
    %p298 = scmp.ne.s32.totalorder %s290, %s292
    %p299 = scmp.eq.s32.totalorder %s25, 1
    %p300 = por %p298, %p299
    %p301 = scmp.ne.s32.totalorder %s292, %s293
    %p302 = scmp.eq.s32.totalorder %s25, 0
    %p303 = por %p301, %p302
    %p304 = scmp.ne.s32.totalorder %s292, %s293
    %p305 = scmp.eq.s32.totalorder %s26, 1
    %p306 = por %p304, %p305
    %p308 = scmp.ne.s32.totalorder %s293, %s307
    %p309 = scmp.eq.s32.totalorder %s26, 0
    %p310 = por %p308, %p309
    %s312 = sadd.s32 %s311, 1
    %p315 = scmp.eq.s32.totalorder %s20, 1
    %p316 = scmp.ne.s32.totalorder %s311, %s313
    %p317 = scmp.eq.s32.totalorder %s20, 0
    %p318 = por %p316, %p317
    %p319 = scmp.ne.s32.totalorder %s311, %s313
    %p320 = scmp.eq.s32.totalorder %s25, 1
    %p321 = por %p319, %p320
    %p322 = scmp.ne.s32.totalorder %s313, %s314
    %p323 = scmp.eq.s32.totalorder %s25, 0
    %p324 = por %p322, %p323
    %p325 = scmp.ne.s32.totalorder %s313, %s314
    %p326 = scmp.eq.s32.totalorder %s26, 1
    %p327 = por %p325, %p326
    %p329 = scmp.ne.s32.totalorder %s314, %s328
    %p330 = scmp.eq.s32.totalorder %s26, 0
    %p331 = por %p329, %p330
    %s332 = ssub.s32 %s20, %s27
    %p333 = scmp.eq.s32.totalorder %s332, 0
    %s335 = sadd.s32 %s334, 1
    %s336 = scalar_select %p333, %s334, %s335
    %p339 = pneg %p333
    %p340 = scmp.eq.s32.totalorder %s20, 1
    %p341 = por %p339, %p340
    %p342 = scmp.ne.s32.totalorder %s334, %s337
    %p343 = scmp.eq.s32.totalorder %s20, 0
    %p344 = por %p342, %p343
    %p345 = scmp.ne.s32.totalorder %s334, %s337
    %p346 = scmp.eq.s32.totalorder %s25, 1
    %p347 = por %p345, %p346
    %p348 = scmp.ne.s32.totalorder %s337, %s338
    %p349 = scmp.eq.s32.totalorder %s25, 0
    %p350 = por %p348, %p349
    %p351 = scmp.ne.s32.totalorder %s337, %s338
    %p352 = scmp.eq.s32.totalorder %s26, 1
    %p353 = por %p351, %p352
    %p355 = scmp.ne.s32.totalorder %s338, %s354
    %p356 = scmp.eq.s32.totalorder %s26, 0
    %p357 = por %p355, %p356
    %p358 = scmp.le.s32.totalorder 1, %s20
    %p359 = scmp.lt.s32.totalorder %s20, 3
    %p360 = pnand %p358, %p359
    %p361 = pneg %p360
    // Predicated region
    $region9: #{bert_classifier_forward.5} parent=5 // pred_check
      _
    $region10: #{bert_classifier_forward.5} parent=5 // pred_check_branch
      %363 = sbr.rel (%p360) target = $region12
    $region11: #{bert_classifier_forward.5} parent=5 // pred_region
      %s364 = ssub.s32 %s20, 1
      // Predicated region
      $region13: #{bert_classifier_forward.5} parent=11 // pred_check
        %p365 = pneg %p93
      $region14: #{bert_classifier_forward.5} parent=11 // pred_check_branch
        %367 = sbr.rel (%p365) target = $region16
      $region15: #{bert_classifier_forward.5} parent=11 // pred_region
        _
      $region16: #{bert_classifier_forward.5} parent=11 // pred_fallthru
        _
      // Predicated region
      $region17: #{bert_classifier_forward.5} parent=11 // pred_check
        %p368 = pneg %p114
      $region18: #{bert_classifier_forward.5} parent=11 // pred_check_branch
        %370 = sbr.rel (%p368) target = $region20
      $region19: #{bert_classifier_forward.5} parent=11 // pred_region
        _
      $region20: #{bert_classifier_forward.5} parent=11 // pred_fallthru
        _
      // Predicated region
      $region21: #{bert_classifier_forward.5} parent=11 // pred_check
        %p371 = pneg %p135
      $region22: #{bert_classifier_forward.5} parent=11 // pred_check_branch
        %373 = sbr.rel (%p371) target = $region24
      $region23: #{bert_classifier_forward.5} parent=11 // pred_region
        _
      $region24: #{bert_classifier_forward.5} parent=11 // pred_fallthru
        _
      // Predicated region
      $region25: #{bert_classifier_forward.5} parent=11 // pred_check
        %p374 = pneg %p156
      $region26: #{bert_classifier_forward.5} parent=11 // pred_check_branch
        %376 = sbr.rel (%p374) target = $region28
      $region27: #{bert_classifier_forward.5} parent=11 // pred_region
        _
      $region28: #{bert_classifier_forward.5} parent=11 // pred_fallthru
        _
      // Predicated region
      $region29: #{bert_classifier_forward.5} parent=11 // pred_check
        %p377 = pneg %p177
      $region30: #{bert_classifier_forward.5} parent=11 // pred_check_branch
        %379 = sbr.rel (%p377) target = $region32
      $region31: #{bert_classifier_forward.5} parent=11 // pred_region
        _
      $region32: #{bert_classifier_forward.5} parent=11 // pred_fallthru
        _
      // Predicated region
      $region33: #{bert_classifier_forward.5} parent=11 // pred_check
        %p380 = pneg %p198
      $region34: #{bert_classifier_forward.5} parent=11 // pred_check_branch
        %382 = sbr.rel (%p380) target = $region36
      $region35: #{bert_classifier_forward.5} parent=11 // pred_region
        _
      $region36: #{bert_classifier_forward.5} parent=11 // pred_fallthru
        _
      // Predicated region
      $region37: #{bert_classifier_forward.5} parent=11 // pred_check
        %p383 = pneg %p219
      $region38: #{bert_classifier_forward.5} parent=11 // pred_check_branch
        %385 = sbr.rel (%p383) target = $region40
      $region39: #{bert_classifier_forward.5} parent=11 // pred_region
        _
      $region40: #{bert_classifier_forward.5} parent=11 // pred_fallthru
        _
      // Predicated region
      $region41: #{bert_classifier_forward.5} parent=11 // pred_check
        %p386 = pneg %p240
      $region42: #{bert_classifier_forward.5} parent=11 // pred_check_branch
        %388 = sbr.rel (%p386) target = $region44
      $region43: #{bert_classifier_forward.5} parent=11 // pred_region
        _
      $region44: #{bert_classifier_forward.5} parent=11 // pred_fallthru
        _
      // Predicated region
      $region45: #{bert_classifier_forward.5} parent=11 // pred_check
        %p389 = pneg %p261
      $region46: #{bert_classifier_forward.5} parent=11 // pred_check_branch
        %391 = sbr.rel (%p389) target = $region48
      $region47: #{bert_classifier_forward.5} parent=11 // pred_region
        _
      $region48: #{bert_classifier_forward.5} parent=11 // pred_fallthru
        _
      // Predicated region
      $region49: #{bert_classifier_forward.5} parent=11 // pred_check
        %p392 = pneg %p282
      $region50: #{bert_classifier_forward.5} parent=11 // pred_check_branch
        %394 = sbr.rel (%p392) target = $region52
      $region51: #{bert_classifier_forward.5} parent=11 // pred_region
        _
      $region52: #{bert_classifier_forward.5} parent=11 // pred_fallthru
        _
      // Predicated region
      $region53: #{bert_classifier_forward.5} parent=11 // pred_check
        %p395 = pneg %p303
      $region54: #{bert_classifier_forward.5} parent=11 // pred_check_branch
        %397 = sbr.rel (%p395) target = $region56
      $region55: #{bert_classifier_forward.5} parent=11 // pred_region
        _
      $region56: #{bert_classifier_forward.5} parent=11 // pred_fallthru
        _
      // Predicated region
      $region57: #{bert_classifier_forward.5} parent=11 // pred_check
        %p398 = pneg %p324
      $region58: #{bert_classifier_forward.5} parent=11 // pred_check_branch
        %400 = sbr.rel (%p398) target = $region60
      $region59: #{bert_classifier_forward.5} parent=11 // pred_region
        _
      $region60: #{bert_classifier_forward.5} parent=11 // pred_fallthru
        _
    $region12: #{bert_classifier_forward.5} parent=5 // pred_fallthru
      _
    %p401 = scmp.lt.s32.totalorder %s20, 2
    // Predicated region
    $region61: #{bert_classifier_forward.5} parent=5 // pred_check
      %p402 = pneg %p401
    $region62: #{bert_classifier_forward.5} parent=5 // pred_check_branch
      %404 = sbr.rel (%p402) target = $region64
    $region63: #{bert_classifier_forward.5} parent=5 // pred_region
      // Predicated region
      $region65: #{bert_classifier_forward.5} parent=63 // pred_check
        %p405 = pneg %p40
      $region66: #{bert_classifier_forward.5} parent=63 // pred_check_branch
        %407 = sbr.rel (%p405) target = $region68
      $region67: #{bert_classifier_forward.5} parent=63 // pred_region
        %p408 = scmp.lt.s32.totalorder %s20, 1
        %s409 = scalar_select %p408, %s20, 1
        %s410 = smul.addr %s409, 8
        %s411 = scalar_lea.vmem %s0, %s410
      $region68: #{bert_classifier_forward.5} parent=63 // pred_fallthru
        _
      // Predicated region
      $region69: #{bert_classifier_forward.5} parent=63 // pred_check
        %p412 = pneg %p66
      $region70: #{bert_classifier_forward.5} parent=63 // pred_check_branch
        %414 = sbr.rel (%p412) target = $region72
      $region71: #{bert_classifier_forward.5} parent=63 // pred_region
        %p415 = scmp.lt.s32.totalorder %s20, 1
        %s416 = scalar_select %p415, %s20, 1
        %s417 = scalar_lea.vmem %s1, %s416
      $region72: #{bert_classifier_forward.5} parent=63 // pred_fallthru
        _
    $region64: #{bert_classifier_forward.5} parent=5 // pred_fallthru
      _
    %p418 = scmp.le.s32.totalorder 1, %s20
    %p419 = scmp.lt.s32.totalorder %s20, 3
    %p420 = pnand %p418, %p419
    %p421 = pneg %p420
    // Predicated region
    $region73: #{bert_classifier_forward.5} parent=5 // pred_check
      _
    $region74: #{bert_classifier_forward.5} parent=5 // pred_check_branch
      %423 = sbr.rel (%p420) target = $region76
    $region75: #{bert_classifier_forward.5} parent=5 // pred_region
      %s424 = ssub.s32 %s20, 1
      %p425 = scmp.lt.s32.totalorder %s25, 1
      %s426 = scalar_select %p425, %s25, 1
      %s427 = smul.addr %s426, 8
      %s428 = scalar_lea.vmem %s0, %s427
      %p429 = pneg %p46
      %p430 = pneg %p43
      %p431 = scmp.lt.s32.totalorder %s25, 1
      %s432 = scalar_select %p431, %s25, 1
      %s433 = scalar_lea.vmem %s1, %s432
      %p434 = pneg %p72
      %p435 = pneg %p69
      %p436 = pneg %p93
      %p437 = pneg %p90
      %p438 = pneg %p114
      %p439 = pneg %p111
      %p440 = pneg %p135
      %p441 = pneg %p132
      %p442 = pneg %p156
      %p443 = pneg %p153
      %p444 = pneg %p177
      %p445 = pneg %p174
      %p446 = pneg %p198
      %p447 = pneg %p195
      %p448 = pneg %p219
      %p449 = pneg %p216
      %p450 = pneg %p240
      %p451 = pneg %p237
      %p452 = pneg %p261
      %p453 = pneg %p258
      %p454 = pneg %p282
      %p455 = pneg %p279
      %p456 = pneg %p303
      %p457 = pneg %p300
      %p458 = pneg %p324
      %p459 = pneg %p321
      %p460 = pneg %p350
      %p461 = pneg %p347
      %p462 = scmp.lt.s32.totalorder %s25, 1
      %s463 = scalar_select %p462, %s25, 1
      %s464 = smul.addr %s463, 8
      %s465 = scalar_lea.vmem %s14, %s464
      %p466 = scmp.lt.s32.totalorder %s25, 1
      %s467 = scalar_select %p466, %s25, 1
      %s468 = smul.addr %s467, 8
      %s469 = scalar_lea.vmem %s0, %s468
      %p470 = scmp.lt.s32.totalorder %s25, 1
      %s471 = scalar_select %p470, %s25, 1
      %s472 = scalar_lea.vmem %s1, %s471
      %p473 = scmp.lt.s32.totalorder %s25, 1
      %s474 = scalar_select %p473, %s25, 1
      %s475 = smul.addr %s474, 8
      %s476 = scalar_lea.vmem %s14, %s475
      %v478 = vld [vmem:[%s469] sm:$0xff]
      %v479 = vld [vmem:[%s472] sm:$0x1]
      %v480 = vpack.c.bf16 %v478, %v478
      %v481 = vld [vmem:[%s2] sm:$0xf]
      %v482 = vld [vmem:[%s2 + $0x4] sm:$0xf]
      %v483 = vld [vmem:[%s2 + $0x8] sm:$0xf]
      %v484 = vld [vmem:[%s2 + $0xc] sm:$0xf]
      %v485 = vld [vmem:[%s2 + $0x10] sm:$0xf]
      %v486 = vld [vmem:[%s2 + $0x14] sm:$0xf]
      %v487 = vld [vmem:[%s2 + $0x18] sm:$0xf]
      %v488 = vld [vmem:[%s2 + $0x1c] sm:$0xf]
      %v489 = vld [vmem:[%s2 + $0x20] sm:$0xf]
      %v490 = vld [vmem:[%s2 + $0x24] sm:$0xf]
      %v491 = vld [vmem:[%s2 + $0x28] sm:$0xf]
      %v492 = vld [vmem:[%s2 + $0x2c] sm:$0xf]
      %v493 = vld [vmem:[%s2 + $0x30] sm:$0xf]
      %v494 = vld [vmem:[%s2 + $0x34] sm:$0xf]
      %v495 = vld [vmem:[%s2 + $0x38] sm:$0xf]
      %v496 = vld [vmem:[%s2 + $0x3c] sm:$0xf]
      %v497 = vld [vmem:[%s3] sm:$0x1]
      %v499 = vlaneseq
      %v500 = vshrl.u32 %v499, 7
      %v501 = vsub.s32 0, %v500
      %v502 = vrot.slane %v497, %v501
      %v520 = vunpack.c.l.b16 %v481
      %v521 = vunpack.c.l.b16 %v482
      %v522 = vunpack.c.l.b16 %v483
      %v523 = vunpack.c.l.b16 %v484
      %v524 = vunpack.c.l.b16 %v485
      %v525 = vunpack.c.l.b16 %v486
      %v526 = vunpack.c.l.b16 %v487
      %v527 = vunpack.c.l.b16 %v488
      %v528 = vunpack.c.l.b16 %v489
      %v529 = vunpack.c.l.b16 %v490
      %v530 = vunpack.c.l.b16 %v491
      %v531 = vunpack.c.l.b16 %v492
      %v532 = vunpack.c.l.b16 %v493
      %v533 = vunpack.c.l.b16 %v494
      %v534 = vunpack.c.l.b16 %v495
      %v535 = vunpack.c.l.b16 %v496
      %v536 = vpack.c.b16 %v521, %v520
      %v537 = vpack.c.b16 %v523, %v522
      %v538 = vpack.c.b16 %v525, %v524
      %v539 = vpack.c.b16 %v527, %v526
      %v540 = vpack.c.b16 %v529, %v528
      %v541 = vpack.c.b16 %v531, %v530
      %v542 = vpack.c.b16 %v533, %v532
      %v543 = vpack.c.b16 %v535, %v534
      %552 = vmatprep.subr.bf16.mxu0 0
      %553 = vmatpush1.bf16.msra.mxu0 %v543
      %554 = vmatprep.subr.bf16.mxu0 0
      %555 = vmatpush1.bf16.msra.mxu0 %v542
      %556 = vmatprep.subr.bf16.mxu0 0
      %557 = vmatpush1.bf16.msra.mxu0 %v541
      %558 = vmatprep.subr.bf16.mxu0 0
      %559 = vmatpush1.bf16.msra.mxu0 %v540
      %560 = vmatprep.subr.bf16.mxu0 0
      %561 = vmatpush1.bf16.msra.mxu0 %v539
      %562 = vmatprep.subr.bf16.mxu0 0
      %563 = vmatpush1.bf16.msra.mxu0 %v538
      %564 = vmatprep.subr.bf16.mxu0 0
      %565 = vmatpush1.bf16.msra.mxu0 %v537
      %566 = vmatprep.subr.bf16.mxu0 0
      %567 = vmatpush1.bf16.msra.mxu0 %v536
      %568 = vmatprep.subr.bf16.mxu0 0
      %569 = vmatpush2.bf16.msra.mxu0 0
      %570 = vmatprep.subr.bf16.mxu0 0
      %571 = vmatpush2.bf16.msra.mxu0 0
      %572 = vmatprep.subr.bf16.mxu0 0
      %573 = vmatpush2.bf16.msra.mxu0 0
      %574 = vmatprep.subr.bf16.mxu0 0
      %575 = vmatpush2.bf16.msra.mxu0 0
      %576 = vmatprep.subr.bf16.mxu0 0
      %577 = vmatpush2.bf16.msra.mxu0 0
      %578 = vmatprep.subr.bf16.mxu0 0
      %579 = vmatpush2.bf16.msra.mxu0 0
      %580 = vmatprep.subr.bf16.mxu0 0
      %581 = vmatpush2.bf16.msra.mxu0 0
      %582 = vmatprep.subr.bf16.mxu0 0
      %583 = vmatpush2.bf16.msra.mxu0 0
      %584 = vmatprep.mubr.bf16.mxu0 0
      %585 = vmatmul.mubr.bf16.gmra.mxu0 %v480
      %v586 = vpop.f32.mrf.mxu0
      %v587 = vadd.f32 %v502, %v586
      %v588 = vpop.f32.mrf.mxu0
      %v589 = vpop.f32.mrf.mxu0
      %v590 = vpop.f32.mrf.mxu0
      %591 = vdwg.mxu0
      %593 = vrot.lane.b32.xlu0 %v587, 96
      %v594 = vpop.permute.xlu0 %593
      %vm595 = vcmask 64512
      %v596 = vsel %vm595, %v587, 0
      %v598 = vsel %vm595, %v594, 0
      %600 = vmatprep.subr.mxu0 0.0
      %601 = vmatpush1.xpose.msra.mxu0 0.0
      %602 = vmatprep.subr.mxu0 0.0
      %603 = vmatpush1.xpose.msra.mxu0 0.0
      %604 = vmatprep.subr.mxu0 0.0
      %605 = vmatpush1.xpose.msra.mxu0 0.0
      %606 = vmatprep.subr.mxu0 0.0
      %607 = vmatpush1.xpose.msra.mxu0 0.0
      %608 = vmatprep.subr.mxu0 0.0
      %609 = vmatpush1.xpose.msra.mxu0 0.0
      %610 = vmatprep.subr.mxu0 0.0
      %611 = vmatpush1.xpose.msra.mxu0 0.0
      %612 = vmatprep.subr.mxu0 0.0
      %613 = vmatpush1.xpose.msra.mxu0 0.0
      %614 = vmatprep.subr.mxu0 0.0
      %615 = vmatpush1.xpose.msra.mxu0 0.0
      %616 = vmatprep.subr.mxu0 0.0
      %617 = vmatpush1.xpose.msra.mxu0 0.0
      %618 = vmatprep.subr.mxu0 0.0
      %619 = vmatpush1.xpose.msra.mxu0 0.0
      %620 = vmatprep.subr.mxu0 0.0
      %621 = vmatpush1.xpose.msra.mxu0 0.0
      %622 = vmatprep.subr.mxu0 0.0
      %623 = vmatpush1.xpose.msra.mxu0 0.0
      %624 = vmatprep.subr.mxu0 0.0
      %625 = vmatpush1.xpose.msra.mxu0 0.0
      %626 = vmatprep.subr.mxu0 0.0
      %627 = vmatpush1.xpose.msra.mxu0 0.0
      %628 = vmatprep.subr.mxu0 0.0
      %629 = vmatpush1.xpose.msra.mxu0 0.0
      %630 = vmatprep.subr.mxu0 0.0
      %631 = vmatpush1.xpose.msra.mxu0 %v598
      %632 = vmatprep.subr.mxu0 0.0
      %633 = vmatpush2.xpose.msra.mxu0 0.0
      %634 = vmatprep.subr.mxu0 0.0
      %635 = vmatpush2.xpose.msra.mxu0 0.0
      %636 = vmatprep.subr.mxu0 0.0
      %637 = vmatpush2.xpose.msra.mxu0 0.0
      %638 = vmatprep.subr.mxu0 0.0
      %639 = vmatpush2.xpose.msra.mxu0 0.0
      %640 = vmatprep.subr.mxu0 0.0
      %641 = vmatpush2.xpose.msra.mxu0 0.0
      %642 = vmatprep.subr.mxu0 0.0
      %643 = vmatpush2.xpose.msra.mxu0 0.0
      %644 = vmatprep.subr.mxu0 0.0
      %645 = vmatpush2.xpose.msra.mxu0 0.0
      %646 = vmatprep.subr.mxu0 0.0
      %647 = vmatpush2.xpose.msra.mxu0 0.0
      %648 = vmatprep.subr.mxu0 0.0
      %649 = vmatpush2.xpose.msra.mxu0 0.0
      %650 = vmatprep.subr.mxu0 0.0
      %651 = vmatpush2.xpose.msra.mxu0 0.0
      %652 = vmatprep.subr.mxu0 0.0
      %653 = vmatpush2.xpose.msra.mxu0 0.0
      %654 = vmatprep.subr.mxu0 0.0
      %655 = vmatpush2.xpose.msra.mxu0 0.0
      %656 = vmatprep.subr.mxu0 0.0
      %657 = vmatpush2.xpose.msra.mxu0 0.0
      %658 = vmatprep.subr.mxu0 0.0
      %659 = vmatpush2.xpose.msra.mxu0 0.0
      %660 = vmatprep.subr.mxu0 0.0
      %661 = vmatpush2.xpose.msra.mxu0 0.0
      %662 = vmatprep.subr.mxu0 0.0
      %663 = vmatpush2.xpose.msra.mxu0 0.0
      %664 = vmatprep.mubr.f32.mxu0 0.0
      %665 = vmatmul.mubr.f32.gmra.mxu0 %v596
      %v666 = vpop.f32.mrf.mxu0
      %v667 = vadd.f32 0.0, %v666
      %v668 = vpop.f32.mrf.mxu0
      %669 = vdwg.mxu0
      %v670 = vmul.f32 %v667, 0.35355338
      %v672 = vlaneseq
      %v673 = vshrl.u32 %v672, 7
      %v674 = vsub.s32 0, %v673
      %v675 = vrot.slane %v479, %v674
      %v677 = vadd.f32 %v670, %v675
      %v678 = vsel %vm595, %v677, -inf
      %679 = vmax.xlane.f32.xlu0 %v678
      %v680 = vpop.xlane.xlu0 %679
      %v681 = vsub.f32 %v677, %v680
      %v682 = vmul.f32 %v681, 1.442695
      %v683 = vpow.pop %v682
      %v684 = vsel %vm595, %v683, 0.0
      %685 = vadd.xlane.f32.xlu0 %v684
      %v686 = vpop.xlane.xlu0 %685
      %v687 = vrcp.pop %v686
      %v688 = vmul.f32 %v683, %v687
      %689 = vrot.lane.b32.xlu0 %v587, 64
      %v690 = vpop.permute.xlu0 %689
      %v693 = vsel %vm595, %v688, 0
      %695 = vmatprep.subr.mxu0 0.0
      %696 = vmatpush1.msra.mxu0 0.0
      %697 = vmatprep.subr.mxu0 0.0
      %698 = vmatpush1.msra.mxu0 0.0
      %699 = vmatprep.subr.mxu0 0.0
      %700 = vmatpush1.msra.mxu0 0.0
      %701 = vmatprep.subr.mxu0 0.0
      %702 = vmatpush1.msra.mxu0 0.0
      %703 = vmatprep.subr.mxu0 0.0
      %704 = vmatpush1.msra.mxu0 0.0
      %705 = vmatprep.subr.mxu0 0.0
      %706 = vmatpush1.msra.mxu0 0.0
      %707 = vmatprep.subr.mxu0 0.0
      %708 = vmatpush1.msra.mxu0 0.0
      %709 = vmatprep.subr.mxu0 0.0
      %710 = vmatpush1.msra.mxu0 0.0
      %711 = vmatprep.subr.mxu0 0.0
      %712 = vmatpush1.msra.mxu0 0.0
      %713 = vmatprep.subr.mxu0 0.0
      %714 = vmatpush1.msra.mxu0 0.0
      %715 = vmatprep.subr.mxu0 0.0
      %716 = vmatpush1.msra.mxu0 0.0
      %717 = vmatprep.subr.mxu0 0.0
      %718 = vmatpush1.msra.mxu0 0.0
      %719 = vmatprep.subr.mxu0 0.0
      %720 = vmatpush1.msra.mxu0 0.0
      %721 = vmatprep.subr.mxu0 0.0
      %722 = vmatpush1.msra.mxu0 0.0
      %723 = vmatprep.subr.mxu0 0.0
      %724 = vmatpush1.msra.mxu0 0.0
      %725 = vmatprep.subr.mxu0 0.0
      %726 = vmatpush1.msra.mxu0 %v690
      %727 = vmatprep.subr.mxu0 0.0
      %728 = vmatpush2.msra.mxu0 0.0
      %729 = vmatprep.subr.mxu0 0.0
      %730 = vmatpush2.msra.mxu0 0.0
      %731 = vmatprep.subr.mxu0 0.0
      %732 = vmatpush2.msra.mxu0 0.0
      %733 = vmatprep.subr.mxu0 0.0
      %734 = vmatpush2.msra.mxu0 0.0
      %735 = vmatprep.subr.mxu0 0.0
      %736 = vmatpush2.msra.mxu0 0.0
      %737 = vmatprep.subr.mxu0 0.0
      %738 = vmatpush2.msra.mxu0 0.0
      %739 = vmatprep.subr.mxu0 0.0
      %740 = vmatpush2.msra.mxu0 0.0
      %741 = vmatprep.subr.mxu0 0.0
      %742 = vmatpush2.msra.mxu0 0.0
      %743 = vmatprep.subr.mxu0 0.0
      %744 = vmatpush2.msra.mxu0 0.0
      %745 = vmatprep.subr.mxu0 0.0
      %746 = vmatpush2.msra.mxu0 0.0
      %747 = vmatprep.subr.mxu0 0.0
      %748 = vmatpush2.msra.mxu0 0.0
      %749 = vmatprep.subr.mxu0 0.0
      %750 = vmatpush2.msra.mxu0 0.0
      %751 = vmatprep.subr.mxu0 0.0
      %752 = vmatpush2.msra.mxu0 0.0
      %753 = vmatprep.subr.mxu0 0.0
      %754 = vmatpush2.msra.mxu0 0.0
      %755 = vmatprep.subr.mxu0 0.0
      %756 = vmatpush2.msra.mxu0 0.0
      %757 = vmatprep.subr.mxu0 0.0
      %758 = vmatpush2.msra.mxu0 0.0
      %759 = vmatprep.mubr.f32.mxu0 0.0
      %760 = vmatmul.mubr.f32.gmra.mxu0 %v693
      %v761 = vpop.f32.mrf.mxu0
      %v762 = vadd.f32 0.0, %v761
      %v763 = vpop.f32.mrf.mxu0
      %764 = vdwg.mxu0
      %765 = vrot.lane.b32.xlu0 %v587, 120
      %v766 = vpop.permute.xlu0 %765
      %767 = vrot.lane.b32.xlu0 %v587, 88
      %v768 = vpop.permute.xlu0 %767
      %v769 = vsel %vm595, %v766, 0
      %v771 = vsel %vm595, %v768, 0
      %773 = vmatprep.subr.mxu0 0.0
      %774 = vmatpush1.xpose.msra.mxu0 0.0
      %775 = vmatprep.subr.mxu0 0.0
      %776 = vmatpush1.xpose.msra.mxu0 0.0
      %777 = vmatprep.subr.mxu0 0.0
      %778 = vmatpush1.xpose.msra.mxu0 0.0
      %779 = vmatprep.subr.mxu0 0.0
      %780 = vmatpush1.xpose.msra.mxu0 0.0
      %781 = vmatprep.subr.mxu0 0.0
      %782 = vmatpush1.xpose.msra.mxu0 0.0
      %783 = vmatprep.subr.mxu0 0.0
      %784 = vmatpush1.xpose.msra.mxu0 0.0
      %785 = vmatprep.subr.mxu0 0.0
      %786 = vmatpush1.xpose.msra.mxu0 0.0
      %787 = vmatprep.subr.mxu0 0.0
      %788 = vmatpush1.xpose.msra.mxu0 0.0
      %789 = vmatprep.subr.mxu0 0.0
      %790 = vmatpush1.xpose.msra.mxu0 0.0
      %791 = vmatprep.subr.mxu0 0.0
      %792 = vmatpush1.xpose.msra.mxu0 0.0
      %793 = vmatprep.subr.mxu0 0.0
      %794 = vmatpush1.xpose.msra.mxu0 0.0
      %795 = vmatprep.subr.mxu0 0.0
      %796 = vmatpush1.xpose.msra.mxu0 0.0
      %797 = vmatprep.subr.mxu0 0.0
      %798 = vmatpush1.xpose.msra.mxu0 0.0
      %799 = vmatprep.subr.mxu0 0.0
      %800 = vmatpush1.xpose.msra.mxu0 0.0
      %801 = vmatprep.subr.mxu0 0.0
      %802 = vmatpush1.xpose.msra.mxu0 0.0
      %803 = vmatprep.subr.mxu0 0.0
      %804 = vmatpush1.xpose.msra.mxu0 %v771
      %805 = vmatprep.subr.mxu0 0.0
      %806 = vmatpush2.xpose.msra.mxu0 0.0
      %807 = vmatprep.subr.mxu0 0.0
      %808 = vmatpush2.xpose.msra.mxu0 0.0
      %809 = vmatprep.subr.mxu0 0.0
      %810 = vmatpush2.xpose.msra.mxu0 0.0
      %811 = vmatprep.subr.mxu0 0.0
      %812 = vmatpush2.xpose.msra.mxu0 0.0
      %813 = vmatprep.subr.mxu0 0.0
      %814 = vmatpush2.xpose.msra.mxu0 0.0
      %815 = vmatprep.subr.mxu0 0.0
      %816 = vmatpush2.xpose.msra.mxu0 0.0
      %817 = vmatprep.subr.mxu0 0.0
      %818 = vmatpush2.xpose.msra.mxu0 0.0
      %819 = vmatprep.subr.mxu0 0.0
      %820 = vmatpush2.xpose.msra.mxu0 0.0
      %821 = vmatprep.subr.mxu0 0.0
      %822 = vmatpush2.xpose.msra.mxu0 0.0
      %823 = vmatprep.subr.mxu0 0.0
      %824 = vmatpush2.xpose.msra.mxu0 0.0
      %825 = vmatprep.subr.mxu0 0.0
      %826 = vmatpush2.xpose.msra.mxu0 0.0
      %827 = vmatprep.subr.mxu0 0.0
      %828 = vmatpush2.xpose.msra.mxu0 0.0
      %829 = vmatprep.subr.mxu0 0.0
      %830 = vmatpush2.xpose.msra.mxu0 0.0
      %831 = vmatprep.subr.mxu0 0.0
      %832 = vmatpush2.xpose.msra.mxu0 0.0
      %833 = vmatprep.subr.mxu0 0.0
      %834 = vmatpush2.xpose.msra.mxu0 0.0
      %835 = vmatprep.subr.mxu0 0.0
      %836 = vmatpush2.xpose.msra.mxu0 0.0
      %837 = vmatprep.mubr.f32.mxu0 0.0
      %838 = vmatmul.mubr.f32.gmra.mxu0 %v769
      %v839 = vpop.f32.mrf.mxu0
      %v840 = vadd.f32 0.0, %v839
      %v841 = vpop.f32.mrf.mxu0
      %842 = vdwg.mxu0
      %v843 = vmul.f32 %v840, 0.35355338
      %v844 = vadd.f32 %v843, %v675
      %v845 = vsel %vm595, %v844, -inf
      %846 = vmax.xlane.f32.xlu0 %v845
      %v847 = vpop.xlane.xlu0 %846
      %v848 = vsub.f32 %v844, %v847
      %v849 = vmul.f32 %v848, 1.442695
      %v850 = vpow.pop %v849
      %v851 = vsel %vm595, %v850, 0.0
      %852 = vadd.xlane.f32.xlu0 %v851
      %v853 = vpop.xlane.xlu0 %852
      %v854 = vrcp.pop %v853
      %v855 = vmul.f32 %v850, %v854
      %856 = vrot.lane.b32.xlu0 %v587, 56
      %v857 = vpop.permute.xlu0 %856
      %v860 = vsel %vm595, %v855, 0
      %862 = vmatprep.subr.mxu0 0.0
      %863 = vmatpush1.msra.mxu0 0.0
      %864 = vmatprep.subr.mxu0 0.0
      %865 = vmatpush1.msra.mxu0 0.0
      %866 = vmatprep.subr.mxu0 0.0
      %867 = vmatpush1.msra.mxu0 0.0
      %868 = vmatprep.subr.mxu0 0.0
      %869 = vmatpush1.msra.mxu0 0.0
      %870 = vmatprep.subr.mxu0 0.0
      %871 = vmatpush1.msra.mxu0 0.0
      %872 = vmatprep.subr.mxu0 0.0
      %873 = vmatpush1.msra.mxu0 0.0
      %874 = vmatprep.subr.mxu0 0.0
      %875 = vmatpush1.msra.mxu0 0.0
      %876 = vmatprep.subr.mxu0 0.0
      %877 = vmatpush1.msra.mxu0 0.0
      %878 = vmatprep.subr.mxu0 0.0
      %879 = vmatpush1.msra.mxu0 0.0
      %880 = vmatprep.subr.mxu0 0.0
      %881 = vmatpush1.msra.mxu0 0.0
      %882 = vmatprep.subr.mxu0 0.0
      %883 = vmatpush1.msra.mxu0 0.0
      %884 = vmatprep.subr.mxu0 0.0
      %885 = vmatpush1.msra.mxu0 0.0
      %886 = vmatprep.subr.mxu0 0.0
      %887 = vmatpush1.msra.mxu0 0.0
      %888 = vmatprep.subr.mxu0 0.0
      %889 = vmatpush1.msra.mxu0 0.0
      %890 = vmatprep.subr.mxu0 0.0
      %891 = vmatpush1.msra.mxu0 0.0
      %892 = vmatprep.subr.mxu0 0.0
      %893 = vmatpush1.msra.mxu0 %v857
      %894 = vmatprep.subr.mxu0 0.0
      %895 = vmatpush2.msra.mxu0 0.0
      %896 = vmatprep.subr.mxu0 0.0
      %897 = vmatpush2.msra.mxu0 0.0
      %898 = vmatprep.subr.mxu0 0.0
      %899 = vmatpush2.msra.mxu0 0.0
      %900 = vmatprep.subr.mxu0 0.0
      %901 = vmatpush2.msra.mxu0 0.0
      %902 = vmatprep.subr.mxu0 0.0
      %903 = vmatpush2.msra.mxu0 0.0
      %904 = vmatprep.subr.mxu0 0.0
      %905 = vmatpush2.msra.mxu0 0.0
      %906 = vmatprep.subr.mxu0 0.0
      %907 = vmatpush2.msra.mxu0 0.0
      %908 = vmatprep.subr.mxu0 0.0
      %909 = vmatpush2.msra.mxu0 0.0
      %910 = vmatprep.subr.mxu0 0.0
      %911 = vmatpush2.msra.mxu0 0.0
      %912 = vmatprep.subr.mxu0 0.0
      %913 = vmatpush2.msra.mxu0 0.0
      %914 = vmatprep.subr.mxu0 0.0
      %915 = vmatpush2.msra.mxu0 0.0
      %916 = vmatprep.subr.mxu0 0.0
      %917 = vmatpush2.msra.mxu0 0.0
      %918 = vmatprep.subr.mxu0 0.0
      %919 = vmatpush2.msra.mxu0 0.0
      %920 = vmatprep.subr.mxu0 0.0
      %921 = vmatpush2.msra.mxu0 0.0
      %922 = vmatprep.subr.mxu0 0.0
      %923 = vmatpush2.msra.mxu0 0.0
      %924 = vmatprep.subr.mxu0 0.0
      %925 = vmatpush2.msra.mxu0 0.0
      %926 = vmatprep.mubr.f32.mxu0 0.0
      %927 = vmatmul.mubr.f32.gmra.mxu0 %v860
      %v928 = vpop.f32.mrf.mxu0
      %v929 = vadd.f32 0.0, %v928
      %v930 = vpop.f32.mrf.mxu0
      %931 = vdwg.mxu0
      %932 = vrot.lane.b32.xlu0 %v587, 112
      %v933 = vpop.permute.xlu0 %932
      %934 = vrot.lane.b32.xlu0 %v587, 80
      %v935 = vpop.permute.xlu0 %934
      %v936 = vsel %vm595, %v933, 0
      %v938 = vsel %vm595, %v935, 0
      %940 = vmatprep.subr.mxu0 0.0
      %941 = vmatpush1.xpose.msra.mxu0 0.0
      %942 = vmatprep.subr.mxu0 0.0
      %943 = vmatpush1.xpose.msra.mxu0 0.0
      %944 = vmatprep.subr.mxu0 0.0
      %945 = vmatpush1.xpose.msra.mxu0 0.0
      %946 = vmatprep.subr.mxu0 0.0
      %947 = vmatpush1.xpose.msra.mxu0 0.0
      %948 = vmatprep.subr.mxu0 0.0
      %949 = vmatpush1.xpose.msra.mxu0 0.0
      %950 = vmatprep.subr.mxu0 0.0
      %951 = vmatpush1.xpose.msra.mxu0 0.0
      %952 = vmatprep.subr.mxu0 0.0
      %953 = vmatpush1.xpose.msra.mxu0 0.0
      %954 = vmatprep.subr.mxu0 0.0
      %955 = vmatpush1.xpose.msra.mxu0 0.0
      %956 = vmatprep.subr.mxu0 0.0
      %957 = vmatpush1.xpose.msra.mxu0 0.0
      %958 = vmatprep.subr.mxu0 0.0
      %959 = vmatpush1.xpose.msra.mxu0 0.0
      %960 = vmatprep.subr.mxu0 0.0
      %961 = vmatpush1.xpose.msra.mxu0 0.0
      %962 = vmatprep.subr.mxu0 0.0
      %963 = vmatpush1.xpose.msra.mxu0 0.0
      %964 = vmatprep.subr.mxu0 0.0
      %965 = vmatpush1.xpose.msra.mxu0 0.0
      %966 = vmatprep.subr.mxu0 0.0
      %967 = vmatpush1.xpose.msra.mxu0 0.0
      %968 = vmatprep.subr.mxu0 0.0
      %969 = vmatpush1.xpose.msra.mxu0 0.0
      %970 = vmatprep.subr.mxu0 0.0
      %971 = vmatpush1.xpose.msra.mxu0 %v938
      %972 = vmatprep.subr.mxu0 0.0
      %973 = vmatpush2.xpose.msra.mxu0 0.0
      %974 = vmatprep.subr.mxu0 0.0
      %975 = vmatpush2.xpose.msra.mxu0 0.0
      %976 = vmatprep.subr.mxu0 0.0
      %977 = vmatpush2.xpose.msra.mxu0 0.0
      %978 = vmatprep.subr.mxu0 0.0
      %979 = vmatpush2.xpose.msra.mxu0 0.0
      %980 = vmatprep.subr.mxu0 0.0
      %981 = vmatpush2.xpose.msra.mxu0 0.0
      %982 = vmatprep.subr.mxu0 0.0
      %983 = vmatpush2.xpose.msra.mxu0 0.0
      %984 = vmatprep.subr.mxu0 0.0
      %985 = vmatpush2.xpose.msra.mxu0 0.0
      %986 = vmatprep.subr.mxu0 0.0
      %987 = vmatpush2.xpose.msra.mxu0 0.0
      %988 = vmatprep.subr.mxu0 0.0
      %989 = vmatpush2.xpose.msra.mxu0 0.0
      %990 = vmatprep.subr.mxu0 0.0
      %991 = vmatpush2.xpose.msra.mxu0 0.0
      %992 = vmatprep.subr.mxu0 0.0
      %993 = vmatpush2.xpose.msra.mxu0 0.0
      %994 = vmatprep.subr.mxu0 0.0
      %995 = vmatpush2.xpose.msra.mxu0 0.0
      %996 = vmatprep.subr.mxu0 0.0
      %997 = vmatpush2.xpose.msra.mxu0 0.0
      %998 = vmatprep.subr.mxu0 0.0
      %999 = vmatpush2.xpose.msra.mxu0 0.0
      %1000 = vmatprep.subr.mxu0 0.0
      %1001 = vmatpush2.xpose.msra.mxu0 0.0
      %1002 = vmatprep.subr.mxu0 0.0
      %1003 = vmatpush2.xpose.msra.mxu0 0.0
      %1004 = vmatprep.mubr.f32.mxu0 0.0
      %1005 = vmatmul.mubr.f32.gmra.mxu0 %v936
      %v1006 = vpop.f32.mrf.mxu0
      %v1007 = vadd.f32 0.0, %v1006
      %v1008 = vpop.f32.mrf.mxu0
      %1009 = vdwg.mxu0
      %v1010 = vmul.f32 %v1007, 0.35355338
      %v1011 = vadd.f32 %v1010, %v675
      %v1012 = vsel %vm595, %v1011, -inf
      %1013 = vmax.xlane.f32.xlu0 %v1012
      %v1014 = vpop.xlane.xlu0 %1013
      %v1015 = vsub.f32 %v1011, %v1014
      %v1016 = vmul.f32 %v1015, 1.442695
      %v1017 = vpow.pop %v1016
      %v1018 = vsel %vm595, %v1017, 0.0
      %1019 = vadd.xlane.f32.xlu0 %v1018
      %v1020 = vpop.xlane.xlu0 %1019
      %v1021 = vrcp.pop %v1020
      %v1022 = vmul.f32 %v1017, %v1021
      %1023 = vrot.lane.b32.xlu0 %v587, 48
      %v1024 = vpop.permute.xlu0 %1023
      %v1027 = vsel %vm595, %v1022, 0
      %1029 = vmatprep.subr.mxu0 0.0
      %1030 = vmatpush1.msra.mxu0 0.0
      %1031 = vmatprep.subr.mxu0 0.0
      %1032 = vmatpush1.msra.mxu0 0.0
      %1033 = vmatprep.subr.mxu0 0.0
      %1034 = vmatpush1.msra.mxu0 0.0
      %1035 = vmatprep.subr.mxu0 0.0
      %1036 = vmatpush1.msra.mxu0 0.0
      %1037 = vmatprep.subr.mxu0 0.0
      %1038 = vmatpush1.msra.mxu0 0.0
      %1039 = vmatprep.subr.mxu0 0.0
      %1040 = vmatpush1.msra.mxu0 0.0
      %1041 = vmatprep.subr.mxu0 0.0
      %1042 = vmatpush1.msra.mxu0 0.0
      %1043 = vmatprep.subr.mxu0 0.0
      %1044 = vmatpush1.msra.mxu0 0.0
      %1045 = vmatprep.subr.mxu0 0.0
      %1046 = vmatpush1.msra.mxu0 0.0
      %1047 = vmatprep.subr.mxu0 0.0
      %1048 = vmatpush1.msra.mxu0 0.0
      %1049 = vmatprep.subr.mxu0 0.0
      %1050 = vmatpush1.msra.mxu0 0.0
      %1051 = vmatprep.subr.mxu0 0.0
      %1052 = vmatpush1.msra.mxu0 0.0
      %1053 = vmatprep.subr.mxu0 0.0
      %1054 = vmatpush1.msra.mxu0 0.0
      %1055 = vmatprep.subr.mxu0 0.0
      %1056 = vmatpush1.msra.mxu0 0.0
      %1057 = vmatprep.subr.mxu0 0.0
      %1058 = vmatpush1.msra.mxu0 0.0
      %1059 = vmatprep.subr.mxu0 0.0
      %1060 = vmatpush1.msra.mxu0 %v1024
      %1061 = vmatprep.subr.mxu0 0.0
      %1062 = vmatpush2.msra.mxu0 0.0
      %1063 = vmatprep.subr.mxu0 0.0
      %1064 = vmatpush2.msra.mxu0 0.0
      %1065 = vmatprep.subr.mxu0 0.0
      %1066 = vmatpush2.msra.mxu0 0.0
      %1067 = vmatprep.subr.mxu0 0.0
      %1068 = vmatpush2.msra.mxu0 0.0
      %1069 = vmatprep.subr.mxu0 0.0
      %1070 = vmatpush2.msra.mxu0 0.0
      %1071 = vmatprep.subr.mxu0 0.0
      %1072 = vmatpush2.msra.mxu0 0.0
      %1073 = vmatprep.subr.mxu0 0.0
      %1074 = vmatpush2.msra.mxu0 0.0
      %1075 = vmatprep.subr.mxu0 0.0
      %1076 = vmatpush2.msra.mxu0 0.0
      %1077 = vmatprep.subr.mxu0 0.0
      %1078 = vmatpush2.msra.mxu0 0.0
      %1079 = vmatprep.subr.mxu0 0.0
      %1080 = vmatpush2.msra.mxu0 0.0
      %1081 = vmatprep.subr.mxu0 0.0
      %1082 = vmatpush2.msra.mxu0 0.0
      %1083 = vmatprep.subr.mxu0 0.0
      %1084 = vmatpush2.msra.mxu0 0.0
      %1085 = vmatprep.subr.mxu0 0.0
      %1086 = vmatpush2.msra.mxu0 0.0
      %1087 = vmatprep.subr.mxu0 0.0
      %1088 = vmatpush2.msra.mxu0 0.0
      %1089 = vmatprep.subr.mxu0 0.0
      %1090 = vmatpush2.msra.mxu0 0.0
      %1091 = vmatprep.subr.mxu0 0.0
      %1092 = vmatpush2.msra.mxu0 0.0
      %1093 = vmatprep.mubr.f32.mxu0 0.0
      %1094 = vmatmul.mubr.f32.gmra.mxu0 %v1027
      %v1095 = vpop.f32.mrf.mxu0
      %v1096 = vadd.f32 0.0, %v1095
      %v1097 = vpop.f32.mrf.mxu0
      %1098 = vdwg.mxu0
      %1099 = vrot.lane.b32.xlu0 %v587, 104
      %v1100 = vpop.permute.xlu0 %1099
      %1101 = vrot.lane.b32.xlu0 %v587, 72
      %v1102 = vpop.permute.xlu0 %1101
      %v1103 = vsel %vm595, %v1100, 0
      %v1105 = vsel %vm595, %v1102, 0
      %1107 = vmatprep.subr.mxu0 0.0
      %1108 = vmatpush1.xpose.msra.mxu0 0.0
      %1109 = vmatprep.subr.mxu0 0.0
      %1110 = vmatpush1.xpose.msra.mxu0 0.0
      %1111 = vmatprep.subr.mxu0 0.0
      %1112 = vmatpush1.xpose.msra.mxu0 0.0
      %1113 = vmatprep.subr.mxu0 0.0
      %1114 = vmatpush1.xpose.msra.mxu0 0.0
      %1115 = vmatprep.subr.mxu0 0.0
      %1116 = vmatpush1.xpose.msra.mxu0 0.0
      %1117 = vmatprep.subr.mxu0 0.0
      %1118 = vmatpush1.xpose.msra.mxu0 0.0
      %1119 = vmatprep.subr.mxu0 0.0
      %1120 = vmatpush1.xpose.msra.mxu0 0.0
      %1121 = vmatprep.subr.mxu0 0.0
      %1122 = vmatpush1.xpose.msra.mxu0 0.0
      %1123 = vmatprep.subr.mxu0 0.0
      %1124 = vmatpush1.xpose.msra.mxu0 0.0
      %1125 = vmatprep.subr.mxu0 0.0
      %1126 = vmatpush1.xpose.msra.mxu0 0.0
      %1127 = vmatprep.subr.mxu0 0.0
      %1128 = vmatpush1.xpose.msra.mxu0 0.0
      %1129 = vmatprep.subr.mxu0 0.0
      %1130 = vmatpush1.xpose.msra.mxu0 0.0
      %1131 = vmatprep.subr.mxu0 0.0
      %1132 = vmatpush1.xpose.msra.mxu0 0.0
      %1133 = vmatprep.subr.mxu0 0.0
      %1134 = vmatpush1.xpose.msra.mxu0 0.0
      %1135 = vmatprep.subr.mxu0 0.0
      %1136 = vmatpush1.xpose.msra.mxu0 0.0
      %1137 = vmatprep.subr.mxu0 0.0
      %1138 = vmatpush1.xpose.msra.mxu0 %v1105
      %1139 = vmatprep.subr.mxu0 0.0
      %1140 = vmatpush2.xpose.msra.mxu0 0.0
      %1141 = vmatprep.subr.mxu0 0.0
      %1142 = vmatpush2.xpose.msra.mxu0 0.0
      %1143 = vmatprep.subr.mxu0 0.0
      %1144 = vmatpush2.xpose.msra.mxu0 0.0
      %1145 = vmatprep.subr.mxu0 0.0
      %1146 = vmatpush2.xpose.msra.mxu0 0.0
      %1147 = vmatprep.subr.mxu0 0.0
      %1148 = vmatpush2.xpose.msra.mxu0 0.0
      %1149 = vmatprep.subr.mxu0 0.0
      %1150 = vmatpush2.xpose.msra.mxu0 0.0
      %1151 = vmatprep.subr.mxu0 0.0
      %1152 = vmatpush2.xpose.msra.mxu0 0.0
      %1153 = vmatprep.subr.mxu0 0.0
      %1154 = vmatpush2.xpose.msra.mxu0 0.0
      %1155 = vmatprep.subr.mxu0 0.0
      %1156 = vmatpush2.xpose.msra.mxu0 0.0
      %1157 = vmatprep.subr.mxu0 0.0
      %1158 = vmatpush2.xpose.msra.mxu0 0.0
      %1159 = vmatprep.subr.mxu0 0.0
      %1160 = vmatpush2.xpose.msra.mxu0 0.0
      %1161 = vmatprep.subr.mxu0 0.0
      %1162 = vmatpush2.xpose.msra.mxu0 0.0
      %1163 = vmatprep.subr.mxu0 0.0
      %1164 = vmatpush2.xpose.msra.mxu0 0.0
      %1165 = vmatprep.subr.mxu0 0.0
      %1166 = vmatpush2.xpose.msra.mxu0 0.0
      %1167 = vmatprep.subr.mxu0 0.0
      %1168 = vmatpush2.xpose.msra.mxu0 0.0
      %1169 = vmatprep.subr.mxu0 0.0
      %1170 = vmatpush2.xpose.msra.mxu0 0.0
      %1171 = vmatprep.mubr.f32.mxu0 0.0
      %1172 = vmatmul.mubr.f32.gmra.mxu0 %v1103
      %v1173 = vpop.f32.mrf.mxu0
      %v1174 = vadd.f32 0.0, %v1173
      %v1175 = vpop.f32.mrf.mxu0
      %1176 = vdwg.mxu0
      %v1177 = vmul.f32 %v1174, 0.35355338
      %v1178 = vadd.f32 %v1177, %v675
      %v1179 = vsel %vm595, %v1178, -inf
      %1180 = vmax.xlane.f32.xlu0 %v1179
      %v1181 = vpop.xlane.xlu0 %1180
      %v1182 = vsub.f32 %v1178, %v1181
      %v1183 = vmul.f32 %v1182, 1.442695
      %v1184 = vpow.pop %v1183
      %v1185 = vsel %vm595, %v1184, 0.0
      %1186 = vadd.xlane.f32.xlu0 %v1185
      %v1187 = vpop.xlane.xlu0 %1186
      %v1188 = vrcp.pop %v1187
      %v1189 = vmul.f32 %v1184, %v1188
      %1190 = vrot.lane.b32.xlu0 %v587, 40
      %v1191 = vpop.permute.xlu0 %1190
      %v1194 = vsel %vm595, %v1189, 0
      %1196 = vmatprep.subr.mxu0 0.0
      %1197 = vmatpush1.msra.mxu0 0.0
      %1198 = vmatprep.subr.mxu0 0.0
      %1199 = vmatpush1.msra.mxu0 0.0
      %1200 = vmatprep.subr.mxu0 0.0
      %1201 = vmatpush1.msra.mxu0 0.0
      %1202 = vmatprep.subr.mxu0 0.0
      %1203 = vmatpush1.msra.mxu0 0.0
      %1204 = vmatprep.subr.mxu0 0.0
      %1205 = vmatpush1.msra.mxu0 0.0
      %1206 = vmatprep.subr.mxu0 0.0
      %1207 = vmatpush1.msra.mxu0 0.0
      %1208 = vmatprep.subr.mxu0 0.0
      %1209 = vmatpush1.msra.mxu0 0.0
      %1210 = vmatprep.subr.mxu0 0.0
      %1211 = vmatpush1.msra.mxu0 0.0
      %1212 = vmatprep.subr.mxu0 0.0
      %1213 = vmatpush1.msra.mxu0 0.0
      %1214 = vmatprep.subr.mxu0 0.0
      %1215 = vmatpush1.msra.mxu0 0.0
      %1216 = vmatprep.subr.mxu0 0.0
      %1217 = vmatpush1.msra.mxu0 0.0
      %1218 = vmatprep.subr.mxu0 0.0
      %1219 = vmatpush1.msra.mxu0 0.0
      %1220 = vmatprep.subr.mxu0 0.0
      %1221 = vmatpush1.msra.mxu0 0.0
      %1222 = vmatprep.subr.mxu0 0.0
      %1223 = vmatpush1.msra.mxu0 0.0
      %1224 = vmatprep.subr.mxu0 0.0
      %1225 = vmatpush1.msra.mxu0 0.0
      %1226 = vmatprep.subr.mxu0 0.0
      %1227 = vmatpush1.msra.mxu0 %v1191
      %1228 = vmatprep.subr.mxu0 0.0
      %1229 = vmatpush2.msra.mxu0 0.0
      %1230 = vmatprep.subr.mxu0 0.0
      %1231 = vmatpush2.msra.mxu0 0.0
      %1232 = vmatprep.subr.mxu0 0.0
      %1233 = vmatpush2.msra.mxu0 0.0
      %1234 = vmatprep.subr.mxu0 0.0
      %1235 = vmatpush2.msra.mxu0 0.0
      %1236 = vmatprep.subr.mxu0 0.0
      %1237 = vmatpush2.msra.mxu0 0.0
      %1238 = vmatprep.subr.mxu0 0.0
      %1239 = vmatpush2.msra.mxu0 0.0
      %1240 = vmatprep.subr.mxu0 0.0
      %1241 = vmatpush2.msra.mxu0 0.0
      %1242 = vmatprep.subr.mxu0 0.0
      %1243 = vmatpush2.msra.mxu0 0.0
      %1244 = vmatprep.subr.mxu0 0.0
      %1245 = vmatpush2.msra.mxu0 0.0
      %1246 = vmatprep.subr.mxu0 0.0
      %1247 = vmatpush2.msra.mxu0 0.0
      %1248 = vmatprep.subr.mxu0 0.0
      %1249 = vmatpush2.msra.mxu0 0.0
      %1250 = vmatprep.subr.mxu0 0.0
      %1251 = vmatpush2.msra.mxu0 0.0
      %1252 = vmatprep.subr.mxu0 0.0
      %1253 = vmatpush2.msra.mxu0 0.0
      %1254 = vmatprep.subr.mxu0 0.0
      %1255 = vmatpush2.msra.mxu0 0.0
      %1256 = vmatprep.subr.mxu0 0.0
      %1257 = vmatpush2.msra.mxu0 0.0
      %1258 = vmatprep.subr.mxu0 0.0
      %1259 = vmatpush2.msra.mxu0 0.0
      %1260 = vmatprep.mubr.f32.mxu0 0.0
      %1261 = vmatmul.mubr.f32.gmra.mxu0 %v1194
      %v1262 = vpop.f32.mrf.mxu0
      %v1263 = vadd.f32 0.0, %v1262
      %v1264 = vpop.f32.mrf.mxu0
      %1265 = vdwg.mxu0
      %1267 = vrot.lane.b32.xlu0 %v929, 8
      %v1268 = vpop.permute.xlu0 %1267
      %1271 = vrot.lane.b32.xlu0 %v1096, 16
      %v1272 = vpop.permute.xlu0 %1271
      %1275 = vrot.lane.b32.xlu0 %v1263, 24
      %v1276 = vpop.permute.xlu0 %1275
      %v1278 = vsel %vm595, %v762, %v1268
      %vm1279 = vcmask 130048
      %v1280 = vsel %vm1279, %v1278, %v1272
      %vm1281 = vcmask 195584
      %v1282 = vsel %vm1281, %v1280, %v1276
      %v1283 = vpack.c.bf16 %v1282, %v1282
      %v1284 = vld [vmem:[%s4] sm:$0xf]
      %v1285 = vld [vmem:[%s4 + $0x4] sm:$0xf]
      %v1286 = vld [vmem:[%s4 + $0x8] sm:$0xf]
      %v1287 = vld [vmem:[%s4 + $0xc] sm:$0xf]
      %v1288 = vld [vmem:[%s5] sm:$0x1]
      %v1290 = vlaneseq
      %v1291 = vshrl.u32 %v1290, 7
      %v1292 = vsub.s32 0, %v1291
      %v1293 = vrot.slane %v1288, %v1292
      %v1299 = vunpack.c.l.b16 %v1284
      %v1300 = vunpack.c.l.b16 %v1285
      %v1301 = vunpack.c.l.b16 %v1286
      %v1302 = vunpack.c.l.b16 %v1287
      %v1303 = vpack.c.b16 %v1300, %v1299
      %v1304 = vpack.c.b16 %v1302, %v1301
      %vm1307 = vcmask 261120
      %v1309 = vsel %vm1307, %v1283, 0
      %1311 = vmatprep.subr.bf16.mxu0 0
      %1312 = vmatpush1.bf16.msra.mxu0 0
      %1313 = vmatprep.subr.bf16.mxu0 0
      %1314 = vmatpush1.bf16.msra.mxu0 0
      %1315 = vmatprep.subr.bf16.mxu0 0
      %1316 = vmatpush1.bf16.msra.mxu0 0
      %1317 = vmatprep.subr.bf16.mxu0 0
      %1318 = vmatpush1.bf16.msra.mxu0 0
      %1319 = vmatprep.subr.bf16.mxu0 0
      %1320 = vmatpush1.bf16.msra.mxu0 0
      %1321 = vmatprep.subr.bf16.mxu0 0
      %1322 = vmatpush1.bf16.msra.mxu0 0
      %1323 = vmatprep.subr.bf16.mxu0 0
      %1324 = vmatpush1.bf16.msra.mxu0 %v1304
      %1325 = vmatprep.subr.bf16.mxu0 0
      %1326 = vmatpush1.bf16.msra.mxu0 %v1303
      %1327 = vmatprep.subr.bf16.mxu0 0
      %1328 = vmatpush2.bf16.msra.mxu0 0
      %1329 = vmatprep.subr.bf16.mxu0 0
      %1330 = vmatpush2.bf16.msra.mxu0 0
      %1331 = vmatprep.subr.bf16.mxu0 0
      %1332 = vmatpush2.bf16.msra.mxu0 0
      %1333 = vmatprep.subr.bf16.mxu0 0
      %1334 = vmatpush2.bf16.msra.mxu0 0
      %1335 = vmatprep.subr.bf16.mxu0 0
      %1336 = vmatpush2.bf16.msra.mxu0 0
      %1337 = vmatprep.subr.bf16.mxu0 0
      %1338 = vmatpush2.bf16.msra.mxu0 0
      %1339 = vmatprep.subr.bf16.mxu0 0
      %1340 = vmatpush2.bf16.msra.mxu0 0
      %1341 = vmatprep.subr.bf16.mxu0 0
      %1342 = vmatpush2.bf16.msra.mxu0 0
      %1343 = vmatprep.mubr.bf16.mxu0 0
      %1344 = vmatmul.mubr.bf16.gmra.mxu0 %v1309
      %v1345 = vpop.f32.mrf.mxu0
      %v1346 = vadd.f32 %v1293, %v1345
      %v1347 = vpop.f32.mrf.mxu0
      %v1348 = vpop.f32.mrf.mxu0
      %v1349 = vpop.f32.mrf.mxu0
      %1350 = vdwg.mxu0
      %v1351 = vadd.f32 %v1346, %v478
      %v1352 = vld [vmem:[%s6] sm:$0x1]
      %v1353 = vld [vmem:[%s7] sm:$0x1]
      %v1354 = vlaneseq
      %v1355 = vand.u32 %v1354, 127
      %vm1356 = vcmp.lt.s32.totalorder %v1355, 32
      %1357 = vadd.xlane.f32.xlu0 %v1351
      %v1358 = vpop.xlane.xlu0 %1357
      %v1359 = vmul.f32 %v1358, 0.03125
      %v1360 = vsub.f32 %v1351, %v1359
      %v1361 = vsel %vm1356, %v1360, 0.0
      %v1362 = vmul.f32 %v1361, %v1361
      %1363 = vadd.xlane.f32.xlu0 %v1362
      %v1364 = vpop.xlane.xlu0 %1363
      %v1365 = vmul.f32 %v1364, 0.03125
      %v1366 = vadd.f32 %v1365, 1e-12
      %v1367 = vrsqrt.pop %v1366
      %v1368 = vmul.f32 %v1361, %v1367
      %v1370 = vlaneseq
      %v1371 = vshrl.u32 %v1370, 7
      %v1372 = vsub.s32 0, %v1371
      %v1373 = vrot.slane %v1352, %v1372
      %v1375 = vmul.f32 %v1368, %v1373
      %v1377 = vlaneseq
      %v1378 = vshrl.u32 %v1377, 7
      %v1379 = vsub.s32 0, %v1378
      %v1380 = vrot.slane %v1353, %v1379
      %v1382 = vadd.f32 %v1375, %v1380
      %v1383 = vpack.c.bf16 %v1382, %v1382
      %v1384 = vld [vmem:[%s8] sm:$0xf]
      %v1385 = vld [vmem:[%s8 + $0x4] sm:$0xf]
      %v1386 = vld [vmem:[%s8 + $0x8] sm:$0xf]
      %v1387 = vld [vmem:[%s8 + $0xc] sm:$0xf]
      %v1388 = vld [vmem:[%s8 + $0x10] sm:$0xf]
      %v1389 = vld [vmem:[%s8 + $0x14] sm:$0xf]
      %v1390 = vld [vmem:[%s8 + $0x18] sm:$0xf]
      %v1391 = vld [vmem:[%s8 + $0x1c] sm:$0xf]
      %v1392 = vld [vmem:[%s8 + $0x20] sm:$0xf]
      %v1393 = vld [vmem:[%s8 + $0x24] sm:$0xf]
      %v1394 = vld [vmem:[%s8 + $0x28] sm:$0xf]
      %v1395 = vld [vmem:[%s8 + $0x2c] sm:$0xf]
      %v1396 = vld [vmem:[%s8 + $0x30] sm:$0xf]
      %v1397 = vld [vmem:[%s8 + $0x34] sm:$0xf]
      %v1398 = vld [vmem:[%s8 + $0x38] sm:$0xf]
      %v1399 = vld [vmem:[%s8 + $0x3c] sm:$0xf]
      %v1400 = vld [vmem:[%s9] sm:$0x1]
      %v1402 = vlaneseq
      %v1403 = vshrl.u32 %v1402, 7
      %v1404 = vsub.s32 0, %v1403
      %v1405 = vrot.slane %v1400, %v1404
      %v1423 = vunpack.c.l.b16 %v1384
      %v1424 = vunpack.c.l.b16 %v1385
      %v1425 = vunpack.c.l.b16 %v1386
      %v1426 = vunpack.c.l.b16 %v1387
      %v1427 = vunpack.c.l.b16 %v1388
      %v1428 = vunpack.c.l.b16 %v1389
      %v1429 = vunpack.c.l.b16 %v1390
      %v1430 = vunpack.c.l.b16 %v1391
      %v1431 = vunpack.c.l.b16 %v1392
      %v1432 = vunpack.c.l.b16 %v1393
      %v1433 = vunpack.c.l.b16 %v1394
      %v1434 = vunpack.c.l.b16 %v1395
      %v1435 = vunpack.c.l.b16 %v1396
      %v1436 = vunpack.c.l.b16 %v1397
      %v1437 = vunpack.c.l.b16 %v1398
      %v1438 = vunpack.c.l.b16 %v1399
      %v1439 = vpack.c.b16 %v1424, %v1423
      %v1440 = vpack.c.b16 %v1426, %v1425
      %v1441 = vpack.c.b16 %v1428, %v1427
      %v1442 = vpack.c.b16 %v1430, %v1429
      %v1443 = vpack.c.b16 %v1432, %v1431
      %v1444 = vpack.c.b16 %v1434, %v1433
      %v1445 = vpack.c.b16 %v1436, %v1435
      %v1446 = vpack.c.b16 %v1438, %v1437
      %1455 = vmatprep.subr.bf16.mxu0 0
      %1456 = vmatpush1.bf16.msra.mxu0 %v1446
      %1457 = vmatprep.subr.bf16.mxu0 0
      %1458 = vmatpush1.bf16.msra.mxu0 %v1445
      %1459 = vmatprep.subr.bf16.mxu0 0
      %1460 = vmatpush1.bf16.msra.mxu0 %v1444
      %1461 = vmatprep.subr.bf16.mxu0 0
      %1462 = vmatpush1.bf16.msra.mxu0 %v1443
      %1463 = vmatprep.subr.bf16.mxu0 0
      %1464 = vmatpush1.bf16.msra.mxu0 %v1442
      %1465 = vmatprep.subr.bf16.mxu0 0
      %1466 = vmatpush1.bf16.msra.mxu0 %v1441
      %1467 = vmatprep.subr.bf16.mxu0 0
      %1468 = vmatpush1.bf16.msra.mxu0 %v1440
      %1469 = vmatprep.subr.bf16.mxu0 0
      %1470 = vmatpush1.bf16.msra.mxu0 %v1439
      %1471 = vmatprep.subr.bf16.mxu0 0
      %1472 = vmatpush2.bf16.msra.mxu0 0
      %1473 = vmatprep.subr.bf16.mxu0 0
      %1474 = vmatpush2.bf16.msra.mxu0 0
      %1475 = vmatprep.subr.bf16.mxu0 0
      %1476 = vmatpush2.bf16.msra.mxu0 0
      %1477 = vmatprep.subr.bf16.mxu0 0
      %1478 = vmatpush2.bf16.msra.mxu0 0
      %1479 = vmatprep.subr.bf16.mxu0 0
      %1480 = vmatpush2.bf16.msra.mxu0 0
      %1481 = vmatprep.subr.bf16.mxu0 0
      %1482 = vmatpush2.bf16.msra.mxu0 0
      %1483 = vmatprep.subr.bf16.mxu0 0
      %1484 = vmatpush2.bf16.msra.mxu0 0
      %1485 = vmatprep.subr.bf16.mxu0 0
      %1486 = vmatpush2.bf16.msra.mxu0 0
      %1487 = vmatprep.mubr.bf16.mxu0 0
      %1488 = vmatmul.mubr.bf16.gmra.mxu0 %v1383
      %v1489 = vpop.f32.mrf.mxu0
      %v1490 = vadd.f32 %v1405, %v1489
      %v1491 = vpop.f32.mrf.mxu0
      %v1492 = vpop.f32.mrf.mxu0
      %v1493 = vpop.f32.mrf.mxu0
      %1494 = vdwg.mxu0
      %v1495 = vmul.f32 %v1490, %v1490
      %v1496 = vmul.f32 %v1490, %v1495
      %v1497 = vmul.f32 %v1496, 0.044715
      %v1498 = vadd.f32 %v1490, %v1497
      %v1499 = vmul.f32 %v1498, 0.7978846
      %v1500 = vtanh.pop %v1499
      %v1501 = vadd.f32 %v1500, 1.0
      %v1502 = vmul.f32 %v1501, 0.5
      %v1503 = vmul.f32 %v1490, %v1502
      %v1504 = vpack.c.bf16 %v1503, %v1503
      %v1505 = vld [vmem:[%s10] sm:$0xf]
      %v1506 = vld [vmem:[%s10 + $0x4] sm:$0xf]
      %v1507 = vld [vmem:[%s10 + $0x8] sm:$0xf]
      %v1508 = vld [vmem:[%s10 + $0xc] sm:$0xf]
      %v1509 = vld [vmem:[%s10 + $0x10] sm:$0xf]
      %v1510 = vld [vmem:[%s10 + $0x14] sm:$0xf]
      %v1511 = vld [vmem:[%s10 + $0x18] sm:$0xf]
      %v1512 = vld [vmem:[%s10 + $0x1c] sm:$0xf]
      %v1513 = vld [vmem:[%s10 + $0x20] sm:$0xf]
      %v1514 = vld [vmem:[%s10 + $0x24] sm:$0xf]
      %v1515 = vld [vmem:[%s10 + $0x28] sm:$0xf]
      %v1516 = vld [vmem:[%s10 + $0x2c] sm:$0xf]
      %v1517 = vld [vmem:[%s10 + $0x30] sm:$0xf]
      %v1518 = vld [vmem:[%s10 + $0x34] sm:$0xf]
      %v1519 = vld [vmem:[%s10 + $0x38] sm:$0xf]
      %v1520 = vld [vmem:[%s10 + $0x3c] sm:$0xf]
      %v1521 = vld [vmem:[%s11] sm:$0x1]
      %v1523 = vlaneseq
      %v1524 = vshrl.u32 %v1523, 7
      %v1525 = vsub.s32 0, %v1524
      %v1526 = vrot.slane %v1521, %v1525
      %v1544 = vunpack.c.l.b16 %v1505
      %v1545 = vunpack.c.l.b16 %v1506
      %v1546 = vunpack.c.l.b16 %v1507
      %v1547 = vunpack.c.l.b16 %v1508
      %v1548 = vunpack.c.l.b16 %v1509
      %v1549 = vunpack.c.l.b16 %v1510
      %v1550 = vunpack.c.l.b16 %v1511
      %v1551 = vunpack.c.l.b16 %v1512
      %v1552 = vunpack.c.l.b16 %v1513
      %v1553 = vunpack.c.l.b16 %v1514
      %v1554 = vunpack.c.l.b16 %v1515
      %v1555 = vunpack.c.l.b16 %v1516
      %v1556 = vunpack.c.l.b16 %v1517
      %v1557 = vunpack.c.l.b16 %v1518
      %v1558 = vunpack.c.l.b16 %v1519
      %v1559 = vunpack.c.l.b16 %v1520
      %v1560 = vpack.c.b16 %v1545, %v1544
      %v1561 = vpack.c.b16 %v1547, %v1546
      %v1562 = vpack.c.b16 %v1549, %v1548
      %v1563 = vpack.c.b16 %v1551, %v1550
      %v1564 = vpack.c.b16 %v1553, %v1552
      %v1565 = vpack.c.b16 %v1555, %v1554
      %v1566 = vpack.c.b16 %v1557, %v1556
      %v1567 = vpack.c.b16 %v1559, %v1558
      %1576 = vmatprep.subr.bf16.mxu0 0
      %1577 = vmatpush1.bf16.msra.mxu0 %v1567
      %1578 = vmatprep.subr.bf16.mxu0 0
      %1579 = vmatpush1.bf16.msra.mxu0 %v1566
      %1580 = vmatprep.subr.bf16.mxu0 0
      %1581 = vmatpush1.bf16.msra.mxu0 %v1565
      %1582 = vmatprep.subr.bf16.mxu0 0
      %1583 = vmatpush1.bf16.msra.mxu0 %v1564
      %1584 = vmatprep.subr.bf16.mxu0 0
      %1585 = vmatpush1.bf16.msra.mxu0 %v1563
      %1586 = vmatprep.subr.bf16.mxu0 0
      %1587 = vmatpush1.bf16.msra.mxu0 %v1562
      %1588 = vmatprep.subr.bf16.mxu0 0
      %1589 = vmatpush1.bf16.msra.mxu0 %v1561
      %1590 = vmatprep.subr.bf16.mxu0 0
      %1591 = vmatpush1.bf16.msra.mxu0 %v1560
      %1592 = vmatprep.subr.bf16.mxu0 0
      %1593 = vmatpush2.bf16.msra.mxu0 0
      %1594 = vmatprep.subr.bf16.mxu0 0
      %1595 = vmatpush2.bf16.msra.mxu0 0
      %1596 = vmatprep.subr.bf16.mxu0 0
      %1597 = vmatpush2.bf16.msra.mxu0 0
      %1598 = vmatprep.subr.bf16.mxu0 0
      %1599 = vmatpush2.bf16.msra.mxu0 0
      %1600 = vmatprep.subr.bf16.mxu0 0
      %1601 = vmatpush2.bf16.msra.mxu0 0
      %1602 = vmatprep.subr.bf16.mxu0 0
      %1603 = vmatpush2.bf16.msra.mxu0 0
      %1604 = vmatprep.subr.bf16.mxu0 0
      %1605 = vmatpush2.bf16.msra.mxu0 0
      %1606 = vmatprep.subr.bf16.mxu0 0
      %1607 = vmatpush2.bf16.msra.mxu0 0
      %1608 = vmatprep.mubr.bf16.mxu0 0
      %1609 = vmatmul.mubr.bf16.gmra.mxu0 %v1504
      %v1610 = vpop.f32.mrf.mxu0
      %v1611 = vadd.f32 %v1526, %v1610
      %v1612 = vpop.f32.mrf.mxu0
      %v1613 = vpop.f32.mrf.mxu0
      %v1614 = vpop.f32.mrf.mxu0
      %1615 = vdwg.mxu0
      %v1616 = vadd.f32 %v1611, %v1382
      %v1617 = vld [vmem:[%s12] sm:$0x1]
      %v1618 = vld [vmem:[%s13] sm:$0x1]
      %1619 = vadd.xlane.f32.xlu0 %v1616
      %v1620 = vpop.xlane.xlu0 %1619
      %v1621 = vmul.f32 %v1620, 0.03125
      %v1622 = vsub.f32 %v1616, %v1621
      %v1623 = vsel %vm1356, %v1622, 0.0
      %v1624 = vmul.f32 %v1623, %v1623
      %1625 = vadd.xlane.f32.xlu0 %v1624
      %v1626 = vpop.xlane.xlu0 %1625
      %v1627 = vmul.f32 %v1626, 0.03125
      %v1628 = vadd.f32 %v1627, 1e-12
      %v1629 = vrsqrt.pop %v1628
      %v1630 = vmul.f32 %v1623, %v1629
      %v1632 = vlaneseq
      %v1633 = vshrl.u32 %v1632, 7
      %v1634 = vsub.s32 0, %v1633
      %v1635 = vrot.slane %v1617, %v1634
      %v1637 = vmul.f32 %v1630, %v1635
      %v1639 = vlaneseq
      %v1640 = vshrl.u32 %v1639, 7
      %v1641 = vsub.s32 0, %v1640
      %v1642 = vrot.slane %v1618, %v1641
      %v1644 = vadd.f32 %v1637, %v1642
      %1645 = vst [vmem:[%s476] sm:$0xff] %v1644
      %p1646 = scmp.lt.s32.totalorder %s25, 1
      %s1647 = scalar_select %p1646, %s25, 1
      %s1648 = smul.addr %s1647, 8
      %s1649 = scalar_lea.vmem %s14, %s1648
      // Predicated region
      $region77: #{bert_classifier_forward.5} parent=75 // pred_check
        %p1650 = pneg %p347
      $region78: #{bert_classifier_forward.5} parent=75 // pred_check_branch
        %1652 = sbr.rel (%p1650) target = $region80
      $region79: #{bert_classifier_forward.5} parent=75 // pred_region
        _
      $region80: #{bert_classifier_forward.5} parent=75 // pred_fallthru
        _
    $region76: #{bert_classifier_forward.5} parent=5 // pred_fallthru
      _
    %p1653 = scmp.le.s32.totalorder 2, %s20
    // Predicated region
    $region81: #{bert_classifier_forward.5} parent=5 // pred_check
      %p1654 = pneg %p1653
    $region82: #{bert_classifier_forward.5} parent=5 // pred_check_branch
      %1656 = sbr.rel (%p1654) target = $region84
    $region83: #{bert_classifier_forward.5} parent=5 // pred_region
      %s1657 = ssub.s32 %s20, 2
      // Predicated region
      $region85: #{bert_classifier_forward.5} parent=83 // pred_check
        %p1658 = pneg %p353
      $region86: #{bert_classifier_forward.5} parent=83 // pred_check_branch
        %1660 = sbr.rel (%p1658) target = $region88
      $region87: #{bert_classifier_forward.5} parent=83 // pred_region
        %p1661 = scmp.lt.s32.totalorder %s26, 1
        %s1662 = scalar_select %p1661, %s26, 1
        %s1663 = smul.addr %s1662, 8
        %s1664 = scalar_lea.vmem %s14, %s1663
      $region88: #{bert_classifier_forward.5} parent=83 // pred_fallthru
        _
    $region84: #{bert_classifier_forward.5} parent=5 // pred_fallthru
      _
  $region6: #{bert_classifier_forward.5} parent=0 // loop_footer
    %s24 = sadd.s32 1, %s20
  $region7: #{bert_classifier_forward.5} parent=0 // loop_footer_branch
    %19 = sbr.rel target = $region3
  $region8: #{bert_classifier_forward.5} parent=0 // loop_exit
    _

</llo_original>
